<compile_context>
chip_gen: v6e
topology: v6e:2x2x1
jax: 0.10.0
libtpu: 0.0.40
codegen_flags: <defaults>
</compile_context>

<pallas_src>
import jax
import jax.numpy as jnp
from jax import lax
from jax.experimental import pallas as pl
from jax.experimental.pallas import tpu as pltpu


_LANE_STRIP = 512   # lanes processed per in-kernel loop iteration (4 f32 vregs wide)
_H_CHUNK = 8        # hidden rows per chunk (= one f32 sublane block)


def _round_up(n, m):
    return ((n + m - 1) // m) * m


def _default_fc1_dtype():
    """bf16 fc1/ReLU on chips whose VPU has a packed-bf16 path (v6e / v7x);
    f32 on v5e (no bf16 VALU) and anything unknown."""
    try:
        kind = jax.devices()[0].device_kind.lower()
    except Exception:
        return jnp.float32
    if ("v6" in kind) or ("v7" in kind) or ("7x" in kind):
        return jnp.bfloat16
    return jnp.float32


def value_net_kernel(x_ref, w1t_ref, b1_ref, w2_ref, b2_ref, o_ref):
    # x_ref  : (S, TB)  features on sublanes, batch on lanes (lane-dense), compute dtype
    # w1t_ref: (H, S)   fc1 weight, (out, in) layout, compute dtype
    # b1_ref : (H, 1)   fc1 bias column, compute dtype
    # w2_ref : (H, 1)   fc2 weight column, f32
    # b2_ref : (1, 1)   fc2 bias, scalar in SMEM, f32
    # o_ref  : (1, TB)  lane-dense output, f32
    s, tb = x_ref.shape
    h_total = w1t_ref.shape[0]
    n_strips = tb // _LANE_STRIP
    b2 = b2_ref[0, 0]

    def strip(t, carry):
        c0 = pl.multiple_of(t * _LANE_STRIP, _LANE_STRIP)
        xs = x_ref[:, pl.ds(c0, _LANE_STRIP)]                    # (S, L)
        # Hoist the sublane broadcast of each feature row once per strip
        # (JAX does not CSE broadcast_in_dim).
        x_rows = [jnp.broadcast_to(xs[k:k + 1, :], (_H_CHUNK, _LANE_STRIP))
                  for k in range(s)]

        # fc1 (K = state_dim outer-product FMAs) + ReLU + fc2, processed in
        # 8-row chunks of the hidden dim with a running f32 partial sum:
        # keeps the working set in vregs (no (H, TB) intermediate to spill)
        # and needs a single cross-sublane reduce per strip.
        part = jnp.zeros((_H_CHUNK, _LANE_STRIP), jnp.float32)
        for c in range(h_total // _H_CHUNK):
            r0 = c * _H_CHUNK
            w1c = w1t_ref[r0:r0 + _H_CHUNK, :]                   # (8, S)
            acc = w1c[:, 0:1] * x_rows[0]
            for k in range(1, s):
                acc = acc + w1c[:, k:k + 1] * x_rows[k]
            hc = jnp.maximum(acc + b1_ref[r0:r0 + _H_CHUNK, :], 0.0)     # ReLU
            # fc2 contribution, accumulated in f32 regardless of fc1 dtype.
            part = part + hc.astype(jnp.float32) * w2_ref[r0:r0 + _H_CHUNK, :]

        out = jnp.sum(part, axis=0, keepdims=True) + b2          # (1, L) f32
        o_ref[:, pl.ds(c0, _LANE_STRIP)] = out.astype(o_ref.dtype)
        return carry

    lax.fori_loop(0, n_strips, strip, 0)


def value_net_forward(x, w1, b1, w2, b2, *, block_b=8192, fc1_dtype=None):
    """Computes relu(x @ w1 + b1) @ w2 + b2 (PyTorch ValueNet forward).

    x : (B, S) float32, w1 : (S, H), b1 : (H,), w2 : (H, 1), b2 : (1,)
    Returns (B, 1) float32.
    """
    B, S = x.shape
    H = w1.shape[1]
    assert H % _H_CHUNK == 0, "hidden_dim must be a multiple of 8"
    if fc1_dtype is None:
        fc1_dtype = _default_fc1_dtype()

    # Batch tiling: lane-align to the 512-lane in-kernel strip, then pick a
    # large tile (amortizes per-grid-step pipeline overhead).  When the whole
    # batch would fit in one block and there is enough work, split it in two
    # so both v7x TensorCores get a share.  VMEM per step stays < ~0.5 MiB,
    # comfortably inside every generation's limit (incl. v7x's 64 MiB).
    block_b = _round_up(max(block_b, _LANE_STRIP), _LANE_STRIP)
    bp = _round_up(B, _LANE_STRIP)
    tb = min(block_b, bp)
    if tb == bp and bp >= 4096:
        tb = _round_up(pl.cdiv(bp, 2), _LANE_STRIP)
    n_blocks = pl.cdiv(bp, tb)

    # Feature-major layout: batch on the lane axis everywhere.  Single fused
    # transpose + cast pass over x; lane padding only when B is not already
    # strip-aligned (at most _LANE_STRIP-1 extra lanes).
    x_t = x.T.astype(fc1_dtype)                                  # (S, B)
    if bp != B:
        x_t = jnp.pad(x_t, ((0, 0), (0, bp - B)))                # (S, bp)
    w1_t = w1.T.astype(fc1_dtype)                                # (H, S)
    b1_c = jnp.reshape(b1, (H, 1)).astype(fc1_dtype)             # (H, 1)
    w2_c = jnp.reshape(w2, (H, 1)).astype(jnp.float32)           # (H, 1)
    b2_s = jnp.reshape(b2, (1, 1)).astype(jnp.float32)           # (1, 1) SMEM scalar

    itemsize = jnp.dtype(fc1_dtype).itemsize
    cost = pl.CostEstimate(
        flops=2 * B * H * (S + 1),
        transcendentals=0,
        bytes_accessed=(bp * S * itemsize) + (4 * bp)
                       + (H * S + H) * itemsize + 4 * (H + 1),
    )

    out_t = pl.pallas_call(
        value_net_kernel,
        out_shape=jax.ShapeDtypeStruct((1, bp), jnp.float32),
        grid=(n_blocks,),
        in_specs=[
            pl.BlockSpec((S, tb), lambda i: (0, i)),             # x: streamed over batch
            pl.BlockSpec((H, S), lambda i: (0, 0)),              # w1^T: resident
            pl.BlockSpec((H, 1), lambda i: (0, 0)),              # b1: resident
            pl.BlockSpec((H, 1), lambda i: (0, 0)),              # w2: resident
            pl.BlockSpec(memory_space=pltpu.MemorySpace.SMEM),   # b2: SMEM scalar
        ],
        out_specs=pl.BlockSpec((1, tb), lambda i: (0, i)),
        compiler_params=pltpu.CompilerParams(
            dimension_semantics=("parallel",),  # shards batch tiles over 2 TCs on v7x
        ),
        cost_estimate=cost,
    )(x_t, w1_t, b1_c, w2_c, b2_s)

    # (1, bp) lane-dense -> the module's (B, 1) output layout (slice + reshape).
    return jnp.reshape(out_t[0, :B], (B, 1))


if __name__ == "__main__":
    # Pendulum-v1 observation dim = 3; hidden_dim as in the module = 128.
    state_dim = 3
    hidden_dim = 128
    batch = 8

    key = jax.random.PRNGKey(0)
    k_x, k_w1, k_b1, k_w2, k_b2 = jax.random.split(key, 5)

    x = jax.random.normal(k_x, (batch, state_dim), dtype=jnp.float32)

    # Deterministic synthetic parameters (PyTorch Linear-like uniform init),
    # stored in (in, out) layout so y = relu(x @ w1 + b1) @ w2 + b2.
    bound1 = 1.0 / jnp.sqrt(state_dim)
    w1 = jax.random.uniform(k_w1, (state_dim, hidden_dim), jnp.float32, -bound1, bound1)
    b1 = jax.random.uniform(k_b1, (hidden_dim,), jnp.float32, -bound1, bound1)

    bound2 = 1.0 / jnp.sqrt(hidden_dim)
    w2 = jax.random.uniform(k_w2, (hidden_dim, 1), jnp.float32, -bound2, bound2)
    b2 = jax.random.uniform(k_b2, (1,), jnp.float32, -bound2, bound2)

    # Reference in plain JAX (f32).
    ref = jnp.maximum(x @ w1 + b1[None, :], 0.0) @ w2 + b2[None, :]

    # Default path: bf16 fc1/ReLU on v6e/v7x, f32 elsewhere (f32 fc2 accumulate).
    out = jax.block_until_ready(value_net_forward(x, w1, b1, w2, b2))
    assert out.shape == (batch, 1)
    auto_dtype = _default_fc1_dtype()
    tol = 1e-5 if auto_dtype == jnp.float32 else 5e-2
    assert jnp.allclose(out, ref, atol=tol, rtol=tol), float(jnp.max(jnp.abs(out - ref)))

    # Also exercise the pure-f32 path with a tight tolerance (works on every chip).
    out32 = jax.block_until_ready(
        value_net_forward(x, w1, b1, w2, b2, fc1_dtype=jnp.float32))
    assert jnp.allclose(out32, ref, atol=1e-5, rtol=1e-5), \
        float(jnp.max(jnp.abs(out32 - ref)))

    print("KERNEL_OK")
</pallas_src>

<mosaic_0001>
module attributes {stable_mosaic.version = 11 : i64} {
  func.func @value_net_kernel(%arg0: i32, %arg1: memref<3x512xf32, #tpu.memory_space<vmem>>, %arg2: memref<128x3xf32, #tpu.memory_space<vmem>>, %arg3: memref<128x1xf32, #tpu.memory_space<vmem>>, %arg4: memref<128x1xf32, #tpu.memory_space<vmem>>, %arg5: memref<1x1xf32, #tpu.memory_space<smem>>, %arg6: memref<1x512xf32, #tpu.memory_space<vmem>>) attributes {dimension_semantics = [#tpu.dimension_semantics<parallel>], iteration_bounds = array<i64: 1>, scalar_prefetch = 0 : i64, scratch_operands = 0 : i64, tpu.core_type = #tpu.core_type<tc>, window_params = [{transform_indices = @transform_0, window_bounds = array<i64: 3, 512>}, {pipeline_mode = #tpu.pipeline_mode<synchronous>, transform_indices = @transform_1, window_bounds = array<i64: 128, 3>}, {pipeline_mode = #tpu.pipeline_mode<synchronous>, transform_indices = @transform_2, window_bounds = array<i64: 128, 1>}, {pipeline_mode = #tpu.pipeline_mode<synchronous>, transform_indices = @transform_3, window_bounds = array<i64: 128, 1>}, {transform_indices = @transform_4, window_bounds = array<i64: 1, 1>}, {transform_indices = @transform_5, window_bounds = array<i64: 1, 512>}]} {
    %c0 = arith.constant 0 : index
    %c0_0 = arith.constant 0 : index
    %0 = memref.load %arg5[%c0, %c0_0] : memref<1x1xf32, #tpu.memory_space<smem>>
    %c0_i32 = arith.constant 0 : i32
    %c512_i32 = arith.constant 512 : i32
    %1 = arith.muli %c0_i32, %c512_i32 : i32
    %2 = tpu.assume_multiple %1, 512 : i32
    %c0_1 = arith.constant 0 : index
    %3 = arith.index_cast %2 : i32 to index
    %4 = vector.load %arg1[%c0_1, %3] : memref<3x512xf32, #tpu.memory_space<vmem>>, vector<3x512xf32>
    %5 = vector.extract_strided_slice %4 {offsets = [0, 0], sizes = [1, 512], strides = [1, 1]} : vector<3x512xf32> to vector<1x512xf32>
    %6 = vector.shape_cast %5 : vector<1x512xf32> to vector<1x512xf32>
    %7 = vector.broadcast %6 : vector<1x512xf32> to vector<8x512xf32>
    %8 = vector.extract_strided_slice %4 {offsets = [1, 0], sizes = [1, 512], strides = [1, 1]} : vector<3x512xf32> to vector<1x512xf32>
    %9 = vector.shape_cast %8 : vector<1x512xf32> to vector<1x512xf32>
    %10 = vector.broadcast %9 : vector<1x512xf32> to vector<8x512xf32>
    %11 = vector.extract_strided_slice %4 {offsets = [2, 0], sizes = [1, 512], strides = [1, 1]} : vector<3x512xf32> to vector<1x512xf32>
    %12 = vector.shape_cast %11 : vector<1x512xf32> to vector<1x512xf32>
    %13 = vector.broadcast %12 : vector<1x512xf32> to vector<8x512xf32>
    %cst = arith.constant 0.000000e+00 : f32
    %14 = vector.broadcast %cst : f32 to vector<8x512xf32>
    %c0_2 = arith.constant 0 : index
    %c0_3 = arith.constant 0 : index
    %15 = vector.load %arg2[%c0_2, %c0_3] : memref<128x3xf32, #tpu.memory_space<vmem>>, vector<8x3xf32>
    %16 = vector.extract_strided_slice %15 {offsets = [0, 0], sizes = [8, 1], strides = [1, 1]} : vector<8x3xf32> to vector<8x1xf32>
    %17 = vector.broadcast %16 : vector<8x1xf32> to vector<8x512xf32>
    %18 = arith.mulf %17, %7 : vector<8x512xf32>
    %19 = vector.extract_strided_slice %15 {offsets = [0, 1], sizes = [8, 1], strides = [1, 1]} : vector<8x3xf32> to vector<8x1xf32>
    %20 = vector.broadcast %19 : vector<8x1xf32> to vector<8x512xf32>
    %21 = arith.mulf %20, %10 : vector<8x512xf32>
    %22 = arith.addf %18, %21 : vector<8x512xf32>
    %23 = vector.extract_strided_slice %15 {offsets = [0, 2], sizes = [8, 1], strides = [1, 1]} : vector<8x3xf32> to vector<8x1xf32>
    %24 = vector.broadcast %23 : vector<8x1xf32> to vector<8x512xf32>
    %25 = arith.mulf %24, %13 : vector<8x512xf32>
    %26 = arith.addf %22, %25 : vector<8x512xf32>
    %c0_4 = arith.constant 0 : index
    %c0_5 = arith.constant 0 : index
    %27 = vector.load %arg3[%c0_4, %c0_5] : memref<128x1xf32, #tpu.memory_space<vmem>>, vector<8x1xf32>
    %28 = vector.broadcast %27 : vector<8x1xf32> to vector<8x512xf32>
    %29 = arith.addf %26, %28 : vector<8x512xf32>
    %cst_6 = arith.constant 0.000000e+00 : f32
    %30 = vector.broadcast %cst_6 : f32 to vector<8x512xf32>
    %31 = arith.maximumf %29, %30 : vector<8x512xf32>
    %c0_7 = arith.constant 0 : index
    %c0_8 = arith.constant 0 : index
    %32 = vector.load %arg4[%c0_7, %c0_8] : memref<128x1xf32, #tpu.memory_space<vmem>>, vector<8x1xf32>
    %33 = vector.broadcast %32 : vector<8x1xf32> to vector<8x512xf32>
    %34 = arith.mulf %31, %33 : vector<8x512xf32>
    %35 = arith.addf %14, %34 : vector<8x512xf32>
    %c8 = arith.constant 8 : index
    %c0_9 = arith.constant 0 : index
    %36 = vector.load %arg2[%c8, %c0_9] : memref<128x3xf32, #tpu.memory_space<vmem>>, vector<8x3xf32>
    %37 = vector.extract_strided_slice %36 {offsets = [0, 0], sizes = [8, 1], strides = [1, 1]} : vector<8x3xf32> to vector<8x1xf32>
    %38 = vector.broadcast %37 : vector<8x1xf32> to vector<8x512xf32>
    %39 = arith.mulf %38, %7 : vector<8x512xf32>
    %40 = vector.extract_strided_slice %36 {offsets = [0, 1], sizes = [8, 1], strides = [1, 1]} : vector<8x3xf32> to vector<8x1xf32>
    %41 = vector.broadcast %40 : vector<8x1xf32> to vector<8x512xf32>
    %42 = arith.mulf %41, %10 : vector<8x512xf32>
    %43 = arith.addf %39, %42 : vector<8x512xf32>
    %44 = vector.extract_strided_slice %36 {offsets = [0, 2], sizes = [8, 1], strides = [1, 1]} : vector<8x3xf32> to vector<8x1xf32>
    %45 = vector.broadcast %44 : vector<8x1xf32> to vector<8x512xf32>
    %46 = arith.mulf %45, %13 : vector<8x512xf32>
    %47 = arith.addf %43, %46 : vector<8x512xf32>
    %c8_10 = arith.constant 8 : index
    %c0_11 = arith.constant 0 : index
    %48 = vector.load %arg3[%c8_10, %c0_11] : memref<128x1xf32, #tpu.memory_space<vmem>>, vector<8x1xf32>
    %49 = vector.broadcast %48 : vector<8x1xf32> to vector<8x512xf32>
    %50 = arith.addf %47, %49 : vector<8x512xf32>
    %cst_12 = arith.constant 0.000000e+00 : f32
    %51 = vector.broadcast %cst_12 : f32 to vector<8x512xf32>
    %52 = arith.maximumf %50, %51 : vector<8x512xf32>
    %c8_13 = arith.constant 8 : index
    %c0_14 = arith.constant 0 : index
    %53 = vector.load %arg4[%c8_13, %c0_14] : memref<128x1xf32, #tpu.memory_space<vmem>>, vector<8x1xf32>
    %54 = vector.broadcast %53 : vector<8x1xf32> to vector<8x512xf32>
    %55 = arith.mulf %52, %54 : vector<8x512xf32>
    %56 = arith.addf %35, %55 : vector<8x512xf32>
    %c16 = arith.constant 16 : index
    %c0_15 = arith.constant 0 : index
    %57 = vector.load %arg2[%c16, %c0_15] : memref<128x3xf32, #tpu.memory_space<vmem>>, vector<8x3xf32>
    %58 = vector.extract_strided_slice %57 {offsets = [0, 0], sizes = [8, 1], strides = [1, 1]} : vector<8x3xf32> to vector<8x1xf32>
    %59 = vector.broadcast %58 : vector<8x1xf32> to vector<8x512xf32>
    %60 = arith.mulf %59, %7 : vector<8x512xf32>
    %61 = vector.extract_strided_slice %57 {offsets = [0, 1], sizes = [8, 1], strides = [1, 1]} : vector<8x3xf32> to vector<8x1xf32>
    %62 = vector.broadcast %61 : vector<8x1xf32> to vector<8x512xf32>
    %63 = arith.mulf %62, %10 : vector<8x512xf32>
    %64 = arith.addf %60, %63 : vector<8x512xf32>
    %65 = vector.extract_strided_slice %57 {offsets = [0, 2], sizes = [8, 1], strides = [1, 1]} : vector<8x3xf32> to vector<8x1xf32>
    %66 = vector.broadcast %65 : vector<8x1xf32> to vector<8x512xf32>
    %67 = arith.mulf %66, %13 : vector<8x512xf32>
    %68 = arith.addf %64, %67 : vector<8x512xf32>
    %c16_16 = arith.constant 16 : index
    %c0_17 = arith.constant 0 : index
    %69 = vector.load %arg3[%c16_16, %c0_17] : memref<128x1xf32, #tpu.memory_space<vmem>>, vector<8x1xf32>
    %70 = vector.broadcast %69 : vector<8x1xf32> to vector<8x512xf32>
    %71 = arith.addf %68, %70 : vector<8x512xf32>
    %cst_18 = arith.constant 0.000000e+00 : f32
    %72 = vector.broadcast %cst_18 : f32 to vector<8x512xf32>
    %73 = arith.maximumf %71, %72 : vector<8x512xf32>
    %c16_19 = arith.constant 16 : index
    %c0_20 = arith.constant 0 : index
    %74 = vector.load %arg4[%c16_19, %c0_20] : memref<128x1xf32, #tpu.memory_space<vmem>>, vector<8x1xf32>
    %75 = vector.broadcast %74 : vector<8x1xf32> to vector<8x512xf32>
    %76 = arith.mulf %73, %75 : vector<8x512xf32>
    %77 = arith.addf %56, %76 : vector<8x512xf32>
    %c24 = arith.constant 24 : index
    %c0_21 = arith.constant 0 : index
    %78 = vector.load %arg2[%c24, %c0_21] : memref<128x3xf32, #tpu.memory_space<vmem>>, vector<8x3xf32>
    %79 = vector.extract_strided_slice %78 {offsets = [0, 0], sizes = [8, 1], strides = [1, 1]} : vector<8x3xf32> to vector<8x1xf32>
    %80 = vector.broadcast %79 : vector<8x1xf32> to vector<8x512xf32>
    %81 = arith.mulf %80, %7 : vector<8x512xf32>
    %82 = vector.extract_strided_slice %78 {offsets = [0, 1], sizes = [8, 1], strides = [1, 1]} : vector<8x3xf32> to vector<8x1xf32>
    %83 = vector.broadcast %82 : vector<8x1xf32> to vector<8x512xf32>
    %84 = arith.mulf %83, %10 : vector<8x512xf32>
    %85 = arith.addf %81, %84 : vector<8x512xf32>
    %86 = vector.extract_strided_slice %78 {offsets = [0, 2], sizes = [8, 1], strides = [1, 1]} : vector<8x3xf32> to vector<8x1xf32>
    %87 = vector.broadcast %86 : vector<8x1xf32> to vector<8x512xf32>
    %88 = arith.mulf %87, %13 : vector<8x512xf32>
    %89 = arith.addf %85, %88 : vector<8x512xf32>
    %c24_22 = arith.constant 24 : index
    %c0_23 = arith.constant 0 : index
    %90 = vector.load %arg3[%c24_22, %c0_23] : memref<128x1xf32, #tpu.memory_space<vmem>>, vector<8x1xf32>
    %91 = vector.broadcast %90 : vector<8x1xf32> to vector<8x512xf32>
    %92 = arith.addf %89, %91 : vector<8x512xf32>
    %cst_24 = arith.constant 0.000000e+00 : f32
    %93 = vector.broadcast %cst_24 : f32 to vector<8x512xf32>
    %94 = arith.maximumf %92, %93 : vector<8x512xf32>
    %c24_25 = arith.constant 24 : index
    %c0_26 = arith.constant 0 : index
    %95 = vector.load %arg4[%c24_25, %c0_26] : memref<128x1xf32, #tpu.memory_space<vmem>>, vector<8x1xf32>
    %96 = vector.broadcast %95 : vector<8x1xf32> to vector<8x512xf32>
    %97 = arith.mulf %94, %96 : vector<8x512xf32>
    %98 = arith.addf %77, %97 : vector<8x512xf32>
    %c32 = arith.constant 32 : index
    %c0_27 = arith.constant 0 : index
    %99 = vector.load %arg2[%c32, %c0_27] : memref<128x3xf32, #tpu.memory_space<vmem>>, vector<8x3xf32>
    %100 = vector.extract_strided_slice %99 {offsets = [0, 0], sizes = [8, 1], strides = [1, 1]} : vector<8x3xf32> to vector<8x1xf32>
    %101 = vector.broadcast %100 : vector<8x1xf32> to vector<8x512xf32>
    %102 = arith.mulf %101, %7 : vector<8x512xf32>
    %103 = vector.extract_strided_slice %99 {offsets = [0, 1], sizes = [8, 1], strides = [1, 1]} : vector<8x3xf32> to vector<8x1xf32>
    %104 = vector.broadcast %103 : vector<8x1xf32> to vector<8x512xf32>
    %105 = arith.mulf %104, %10 : vector<8x512xf32>
    %106 = arith.addf %102, %105 : vector<8x512xf32>
    %107 = vector.extract_strided_slice %99 {offsets = [0, 2], sizes = [8, 1], strides = [1, 1]} : vector<8x3xf32> to vector<8x1xf32>
    %108 = vector.broadcast %107 : vector<8x1xf32> to vector<8x512xf32>
    %109 = arith.mulf %108, %13 : vector<8x512xf32>
    %110 = arith.addf %106, %109 : vector<8x512xf32>
    %c32_28 = arith.constant 32 : index
    %c0_29 = arith.constant 0 : index
    %111 = vector.load %arg3[%c32_28, %c0_29] : memref<128x1xf32, #tpu.memory_space<vmem>>, vector<8x1xf32>
    %112 = vector.broadcast %111 : vector<8x1xf32> to vector<8x512xf32>
    %113 = arith.addf %110, %112 : vector<8x512xf32>
    %cst_30 = arith.constant 0.000000e+00 : f32
    %114 = vector.broadcast %cst_30 : f32 to vector<8x512xf32>
    %115 = arith.maximumf %113, %114 : vector<8x512xf32>
    %c32_31 = arith.constant 32 : index
    %c0_32 = arith.constant 0 : index
    %116 = vector.load %arg4[%c32_31, %c0_32] : memref<128x1xf32, #tpu.memory_space<vmem>>, vector<8x1xf32>
    %117 = vector.broadcast %116 : vector<8x1xf32> to vector<8x512xf32>
    %118 = arith.mulf %115, %117 : vector<8x512xf32>
    %119 = arith.addf %98, %118 : vector<8x512xf32>
    %c40 = arith.constant 40 : index
    %c0_33 = arith.constant 0 : index
    %120 = vector.load %arg2[%c40, %c0_33] : memref<128x3xf32, #tpu.memory_space<vmem>>, vector<8x3xf32>
    %121 = vector.extract_strided_slice %120 {offsets = [0, 0], sizes = [8, 1], strides = [1, 1]} : vector<8x3xf32> to vector<8x1xf32>
    %122 = vector.broadcast %121 : vector<8x1xf32> to vector<8x512xf32>
    %123 = arith.mulf %122, %7 : vector<8x512xf32>
    %124 = vector.extract_strided_slice %120 {offsets = [0, 1], sizes = [8, 1], strides = [1, 1]} : vector<8x3xf32> to vector<8x1xf32>
    %125 = vector.broadcast %124 : vector<8x1xf32> to vector<8x512xf32>
    %126 = arith.mulf %125, %10 : vector<8x512xf32>
    %127 = arith.addf %123, %126 : vector<8x512xf32>
    %128 = vector.extract_strided_slice %120 {offsets = [0, 2], sizes = [8, 1], strides = [1, 1]} : vector<8x3xf32> to vector<8x1xf32>
    %129 = vector.broadcast %128 : vector<8x1xf32> to vector<8x512xf32>
    %130 = arith.mulf %129, %13 : vector<8x512xf32>
    %131 = arith.addf %127, %130 : vector<8x512xf32>
    %c40_34 = arith.constant 40 : index
    %c0_35 = arith.constant 0 : index
    %132 = vector.load %arg3[%c40_34, %c0_35] : memref<128x1xf32, #tpu.memory_space<vmem>>, vector<8x1xf32>
    %133 = vector.broadcast %132 : vector<8x1xf32> to vector<8x512xf32>
    %134 = arith.addf %131, %133 : vector<8x512xf32>
    %cst_36 = arith.constant 0.000000e+00 : f32
    %135 = vector.broadcast %cst_36 : f32 to vector<8x512xf32>
    %136 = arith.maximumf %134, %135 : vector<8x512xf32>
    %c40_37 = arith.constant 40 : index
    %c0_38 = arith.constant 0 : index
    %137 = vector.load %arg4[%c40_37, %c0_38] : memref<128x1xf32, #tpu.memory_space<vmem>>, vector<8x1xf32>
    %138 = vector.broadcast %137 : vector<8x1xf32> to vector<8x512xf32>
    %139 = arith.mulf %136, %138 : vector<8x512xf32>
    %140 = arith.addf %119, %139 : vector<8x512xf32>
    %c48 = arith.constant 48 : index
    %c0_39 = arith.constant 0 : index
    %141 = vector.load %arg2[%c48, %c0_39] : memref<128x3xf32, #tpu.memory_space<vmem>>, vector<8x3xf32>
    %142 = vector.extract_strided_slice %141 {offsets = [0, 0], sizes = [8, 1], strides = [1, 1]} : vector<8x3xf32> to vector<8x1xf32>
    %143 = vector.broadcast %142 : vector<8x1xf32> to vector<8x512xf32>
    %144 = arith.mulf %143, %7 : vector<8x512xf32>
    %145 = vector.extract_strided_slice %141 {offsets = [0, 1], sizes = [8, 1], strides = [1, 1]} : vector<8x3xf32> to vector<8x1xf32>
    %146 = vector.broadcast %145 : vector<8x1xf32> to vector<8x512xf32>
    %147 = arith.mulf %146, %10 : vector<8x512xf32>
    %148 = arith.addf %144, %147 : vector<8x512xf32>
    %149 = vector.extract_strided_slice %141 {offsets = [0, 2], sizes = [8, 1], strides = [1, 1]} : vector<8x3xf32> to vector<8x1xf32>
    %150 = vector.broadcast %149 : vector<8x1xf32> to vector<8x512xf32>
    %151 = arith.mulf %150, %13 : vector<8x512xf32>
    %152 = arith.addf %148, %151 : vector<8x512xf32>
    %c48_40 = arith.constant 48 : index
    %c0_41 = arith.constant 0 : index
    %153 = vector.load %arg3[%c48_40, %c0_41] : memref<128x1xf32, #tpu.memory_space<vmem>>, vector<8x1xf32>
    %154 = vector.broadcast %153 : vector<8x1xf32> to vector<8x512xf32>
    %155 = arith.addf %152, %154 : vector<8x512xf32>
    %cst_42 = arith.constant 0.000000e+00 : f32
    %156 = vector.broadcast %cst_42 : f32 to vector<8x512xf32>
    %157 = arith.maximumf %155, %156 : vector<8x512xf32>
    %c48_43 = arith.constant 48 : index
    %c0_44 = arith.constant 0 : index
    %158 = vector.load %arg4[%c48_43, %c0_44] : memref<128x1xf32, #tpu.memory_space<vmem>>, vector<8x1xf32>
    %159 = vector.broadcast %158 : vector<8x1xf32> to vector<8x512xf32>
    %160 = arith.mulf %157, %159 : vector<8x512xf32>
    %161 = arith.addf %140, %160 : vector<8x512xf32>
    %c56 = arith.constant 56 : index
    %c0_45 = arith.constant 0 : index
    %162 = vector.load %arg2[%c56, %c0_45] : memref<128x3xf32, #tpu.memory_space<vmem>>, vector<8x3xf32>
    %163 = vector.extract_strided_slice %162 {offsets = [0, 0], sizes = [8, 1], strides = [1, 1]} : vector<8x3xf32> to vector<8x1xf32>
    %164 = vector.broadcast %163 : vector<8x1xf32> to vector<8x512xf32>
    %165 = arith.mulf %164, %7 : vector<8x512xf32>
    %166 = vector.extract_strided_slice %162 {offsets = [0, 1], sizes = [8, 1], strides = [1, 1]} : vector<8x3xf32> to vector<8x1xf32>
    %167 = vector.broadcast %166 : vector<8x1xf32> to vector<8x512xf32>
    %168 = arith.mulf %167, %10 : vector<8x512xf32>
    %169 = arith.addf %165, %168 : vector<8x512xf32>
    %170 = vector.extract_strided_slice %162 {offsets = [0, 2], sizes = [8, 1], strides = [1, 1]} : vector<8x3xf32> to vector<8x1xf32>
    %171 = vector.broadcast %170 : vector<8x1xf32> to vector<8x512xf32>
    %172 = arith.mulf %171, %13 : vector<8x512xf32>
    %173 = arith.addf %169, %172 : vector<8x512xf32>
    %c56_46 = arith.constant 56 : index
    %c0_47 = arith.constant 0 : index
    %174 = vector.load %arg3[%c56_46, %c0_47] : memref<128x1xf32, #tpu.memory_space<vmem>>, vector<8x1xf32>
    %175 = vector.broadcast %174 : vector<8x1xf32> to vector<8x512xf32>
    %176 = arith.addf %173, %175 : vector<8x512xf32>
    %cst_48 = arith.constant 0.000000e+00 : f32
    %177 = vector.broadcast %cst_48 : f32 to vector<8x512xf32>
    %178 = arith.maximumf %176, %177 : vector<8x512xf32>
    %c56_49 = arith.constant 56 : index
    %c0_50 = arith.constant 0 : index
    %179 = vector.load %arg4[%c56_49, %c0_50] : memref<128x1xf32, #tpu.memory_space<vmem>>, vector<8x1xf32>
    %180 = vector.broadcast %179 : vector<8x1xf32> to vector<8x512xf32>
    %181 = arith.mulf %178, %180 : vector<8x512xf32>
    %182 = arith.addf %161, %181 : vector<8x512xf32>
    %c64 = arith.constant 64 : index
    %c0_51 = arith.constant 0 : index
    %183 = vector.load %arg2[%c64, %c0_51] : memref<128x3xf32, #tpu.memory_space<vmem>>, vector<8x3xf32>
    %184 = vector.extract_strided_slice %183 {offsets = [0, 0], sizes = [8, 1], strides = [1, 1]} : vector<8x3xf32> to vector<8x1xf32>
    %185 = vector.broadcast %184 : vector<8x1xf32> to vector<8x512xf32>
    %186 = arith.mulf %185, %7 : vector<8x512xf32>
    %187 = vector.extract_strided_slice %183 {offsets = [0, 1], sizes = [8, 1], strides = [1, 1]} : vector<8x3xf32> to vector<8x1xf32>
    %188 = vector.broadcast %187 : vector<8x1xf32> to vector<8x512xf32>
    %189 = arith.mulf %188, %10 : vector<8x512xf32>
    %190 = arith.addf %186, %189 : vector<8x512xf32>
    %191 = vector.extract_strided_slice %183 {offsets = [0, 2], sizes = [8, 1], strides = [1, 1]} : vector<8x3xf32> to vector<8x1xf32>
    %192 = vector.broadcast %191 : vector<8x1xf32> to vector<8x512xf32>
    %193 = arith.mulf %192, %13 : vector<8x512xf32>
    %194 = arith.addf %190, %193 : vector<8x512xf32>
    %c64_52 = arith.constant 64 : index
    %c0_53 = arith.constant 0 : index
    %195 = vector.load %arg3[%c64_52, %c0_53] : memref<128x1xf32, #tpu.memory_space<vmem>>, vector<8x1xf32>
    %196 = vector.broadcast %195 : vector<8x1xf32> to vector<8x512xf32>
    %197 = arith.addf %194, %196 : vector<8x512xf32>
    %cst_54 = arith.constant 0.000000e+00 : f32
    %198 = vector.broadcast %cst_54 : f32 to vector<8x512xf32>
    %199 = arith.maximumf %197, %198 : vector<8x512xf32>
    %c64_55 = arith.constant 64 : index
    %c0_56 = arith.constant 0 : index
    %200 = vector.load %arg4[%c64_55, %c0_56] : memref<128x1xf32, #tpu.memory_space<vmem>>, vector<8x1xf32>
    %201 = vector.broadcast %200 : vector<8x1xf32> to vector<8x512xf32>
    %202 = arith.mulf %199, %201 : vector<8x512xf32>
    %203 = arith.addf %182, %202 : vector<8x512xf32>
    %c72 = arith.constant 72 : index
    %c0_57 = arith.constant 0 : index
    %204 = vector.load %arg2[%c72, %c0_57] : memref<128x3xf32, #tpu.memory_space<vmem>>, vector<8x3xf32>
    %205 = vector.extract_strided_slice %204 {offsets = [0, 0], sizes = [8, 1], strides = [1, 1]} : vector<8x3xf32> to vector<8x1xf32>
    %206 = vector.broadcast %205 : vector<8x1xf32> to vector<8x512xf32>
    %207 = arith.mulf %206, %7 : vector<8x512xf32>
    %208 = vector.extract_strided_slice %204 {offsets = [0, 1], sizes = [8, 1], strides = [1, 1]} : vector<8x3xf32> to vector<8x1xf32>
    %209 = vector.broadcast %208 : vector<8x1xf32> to vector<8x512xf32>
    %210 = arith.mulf %209, %10 : vector<8x512xf32>
    %211 = arith.addf %207, %210 : vector<8x512xf32>
    %212 = vector.extract_strided_slice %204 {offsets = [0, 2], sizes = [8, 1], strides = [1, 1]} : vector<8x3xf32> to vector<8x1xf32>
    %213 = vector.broadcast %212 : vector<8x1xf32> to vector<8x512xf32>
    %214 = arith.mulf %213, %13 : vector<8x512xf32>
    %215 = arith.addf %211, %214 : vector<8x512xf32>
    %c72_58 = arith.constant 72 : index
    %c0_59 = arith.constant 0 : index
    %216 = vector.load %arg3[%c72_58, %c0_59] : memref<128x1xf32, #tpu.memory_space<vmem>>, vector<8x1xf32>
    %217 = vector.broadcast %216 : vector<8x1xf32> to vector<8x512xf32>
    %218 = arith.addf %215, %217 : vector<8x512xf32>
    %cst_60 = arith.constant 0.000000e+00 : f32
    %219 = vector.broadcast %cst_60 : f32 to vector<8x512xf32>
    %220 = arith.maximumf %218, %219 : vector<8x512xf32>
    %c72_61 = arith.constant 72 : index
    %c0_62 = arith.constant 0 : index
    %221 = vector.load %arg4[%c72_61, %c0_62] : memref<128x1xf32, #tpu.memory_space<vmem>>, vector<8x1xf32>
    %222 = vector.broadcast %221 : vector<8x1xf32> to vector<8x512xf32>
    %223 = arith.mulf %220, %222 : vector<8x512xf32>
    %224 = arith.addf %203, %223 : vector<8x512xf32>
    %c80 = arith.constant 80 : index
    %c0_63 = arith.constant 0 : index
    %225 = vector.load %arg2[%c80, %c0_63] : memref<128x3xf32, #tpu.memory_space<vmem>>, vector<8x3xf32>
    %226 = vector.extract_strided_slice %225 {offsets = [0, 0], sizes = [8, 1], strides = [1, 1]} : vector<8x3xf32> to vector<8x1xf32>
    %227 = vector.broadcast %226 : vector<8x1xf32> to vector<8x512xf32>
    %228 = arith.mulf %227, %7 : vector<8x512xf32>
    %229 = vector.extract_strided_slice %225 {offsets = [0, 1], sizes = [8, 1], strides = [1, 1]} : vector<8x3xf32> to vector<8x1xf32>
    %230 = vector.broadcast %229 : vector<8x1xf32> to vector<8x512xf32>
    %231 = arith.mulf %230, %10 : vector<8x512xf32>
    %232 = arith.addf %228, %231 : vector<8x512xf32>
    %233 = vector.extract_strided_slice %225 {offsets = [0, 2], sizes = [8, 1], strides = [1, 1]} : vector<8x3xf32> to vector<8x1xf32>
    %234 = vector.broadcast %233 : vector<8x1xf32> to vector<8x512xf32>
    %235 = arith.mulf %234, %13 : vector<8x512xf32>
    %236 = arith.addf %232, %235 : vector<8x512xf32>
    %c80_64 = arith.constant 80 : index
    %c0_65 = arith.constant 0 : index
    %237 = vector.load %arg3[%c80_64, %c0_65] : memref<128x1xf32, #tpu.memory_space<vmem>>, vector<8x1xf32>
    %238 = vector.broadcast %237 : vector<8x1xf32> to vector<8x512xf32>
    %239 = arith.addf %236, %238 : vector<8x512xf32>
    %cst_66 = arith.constant 0.000000e+00 : f32
    %240 = vector.broadcast %cst_66 : f32 to vector<8x512xf32>
    %241 = arith.maximumf %239, %240 : vector<8x512xf32>
    %c80_67 = arith.constant 80 : index
    %c0_68 = arith.constant 0 : index
    %242 = vector.load %arg4[%c80_67, %c0_68] : memref<128x1xf32, #tpu.memory_space<vmem>>, vector<8x1xf32>
    %243 = vector.broadcast %242 : vector<8x1xf32> to vector<8x512xf32>
    %244 = arith.mulf %241, %243 : vector<8x512xf32>
    %245 = arith.addf %224, %244 : vector<8x512xf32>
    %c88 = arith.constant 88 : index
    %c0_69 = arith.constant 0 : index
    %246 = vector.load %arg2[%c88, %c0_69] : memref<128x3xf32, #tpu.memory_space<vmem>>, vector<8x3xf32>
    %247 = vector.extract_strided_slice %246 {offsets = [0, 0], sizes = [8, 1], strides = [1, 1]} : vector<8x3xf32> to vector<8x1xf32>
    %248 = vector.broadcast %247 : vector<8x1xf32> to vector<8x512xf32>
    %249 = arith.mulf %248, %7 : vector<8x512xf32>
    %250 = vector.extract_strided_slice %246 {offsets = [0, 1], sizes = [8, 1], strides = [1, 1]} : vector<8x3xf32> to vector<8x1xf32>
    %251 = vector.broadcast %250 : vector<8x1xf32> to vector<8x512xf32>
    %252 = arith.mulf %251, %10 : vector<8x512xf32>
    %253 = arith.addf %249, %252 : vector<8x512xf32>
    %254 = vector.extract_strided_slice %246 {offsets = [0, 2], sizes = [8, 1], strides = [1, 1]} : vector<8x3xf32> to vector<8x1xf32>
    %255 = vector.broadcast %254 : vector<8x1xf32> to vector<8x512xf32>
    %256 = arith.mulf %255, %13 : vector<8x512xf32>
    %257 = arith.addf %253, %256 : vector<8x512xf32>
    %c88_70 = arith.constant 88 : index
    %c0_71 = arith.constant 0 : index
    %258 = vector.load %arg3[%c88_70, %c0_71] : memref<128x1xf32, #tpu.memory_space<vmem>>, vector<8x1xf32>
    %259 = vector.broadcast %258 : vector<8x1xf32> to vector<8x512xf32>
    %260 = arith.addf %257, %259 : vector<8x512xf32>
    %cst_72 = arith.constant 0.000000e+00 : f32
    %261 = vector.broadcast %cst_72 : f32 to vector<8x512xf32>
    %262 = arith.maximumf %260, %261 : vector<8x512xf32>
    %c88_73 = arith.constant 88 : index
    %c0_74 = arith.constant 0 : index
    %263 = vector.load %arg4[%c88_73, %c0_74] : memref<128x1xf32, #tpu.memory_space<vmem>>, vector<8x1xf32>
    %264 = vector.broadcast %263 : vector<8x1xf32> to vector<8x512xf32>
    %265 = arith.mulf %262, %264 : vector<8x512xf32>
    %266 = arith.addf %245, %265 : vector<8x512xf32>
    %c96 = arith.constant 96 : index
    %c0_75 = arith.constant 0 : index
    %267 = vector.load %arg2[%c96, %c0_75] : memref<128x3xf32, #tpu.memory_space<vmem>>, vector<8x3xf32>
    %268 = vector.extract_strided_slice %267 {offsets = [0, 0], sizes = [8, 1], strides = [1, 1]} : vector<8x3xf32> to vector<8x1xf32>
    %269 = vector.broadcast %268 : vector<8x1xf32> to vector<8x512xf32>
    %270 = arith.mulf %269, %7 : vector<8x512xf32>
    %271 = vector.extract_strided_slice %267 {offsets = [0, 1], sizes = [8, 1], strides = [1, 1]} : vector<8x3xf32> to vector<8x1xf32>
    %272 = vector.broadcast %271 : vector<8x1xf32> to vector<8x512xf32>
    %273 = arith.mulf %272, %10 : vector<8x512xf32>
    %274 = arith.addf %270, %273 : vector<8x512xf32>
    %275 = vector.extract_strided_slice %267 {offsets = [0, 2], sizes = [8, 1], strides = [1, 1]} : vector<8x3xf32> to vector<8x1xf32>
    %276 = vector.broadcast %275 : vector<8x1xf32> to vector<8x512xf32>
    %277 = arith.mulf %276, %13 : vector<8x512xf32>
    %278 = arith.addf %274, %277 : vector<8x512xf32>
    %c96_76 = arith.constant 96 : index
    %c0_77 = arith.constant 0 : index
    %279 = vector.load %arg3[%c96_76, %c0_77] : memref<128x1xf32, #tpu.memory_space<vmem>>, vector<8x1xf32>
    %280 = vector.broadcast %279 : vector<8x1xf32> to vector<8x512xf32>
    %281 = arith.addf %278, %280 : vector<8x512xf32>
    %cst_78 = arith.constant 0.000000e+00 : f32
    %282 = vector.broadcast %cst_78 : f32 to vector<8x512xf32>
    %283 = arith.maximumf %281, %282 : vector<8x512xf32>
    %c96_79 = arith.constant 96 : index
    %c0_80 = arith.constant 0 : index
    %284 = vector.load %arg4[%c96_79, %c0_80] : memref<128x1xf32, #tpu.memory_space<vmem>>, vector<8x1xf32>
    %285 = vector.broadcast %284 : vector<8x1xf32> to vector<8x512xf32>
    %286 = arith.mulf %283, %285 : vector<8x512xf32>
    %287 = arith.addf %266, %286 : vector<8x512xf32>
    %c104 = arith.constant 104 : index
    %c0_81 = arith.constant 0 : index
    %288 = vector.load %arg2[%c104, %c0_81] : memref<128x3xf32, #tpu.memory_space<vmem>>, vector<8x3xf32>
    %289 = vector.extract_strided_slice %288 {offsets = [0, 0], sizes = [8, 1], strides = [1, 1]} : vector<8x3xf32> to vector<8x1xf32>
    %290 = vector.broadcast %289 : vector<8x1xf32> to vector<8x512xf32>
    %291 = arith.mulf %290, %7 : vector<8x512xf32>
    %292 = vector.extract_strided_slice %288 {offsets = [0, 1], sizes = [8, 1], strides = [1, 1]} : vector<8x3xf32> to vector<8x1xf32>
    %293 = vector.broadcast %292 : vector<8x1xf32> to vector<8x512xf32>
    %294 = arith.mulf %293, %10 : vector<8x512xf32>
    %295 = arith.addf %291, %294 : vector<8x512xf32>
    %296 = vector.extract_strided_slice %288 {offsets = [0, 2], sizes = [8, 1], strides = [1, 1]} : vector<8x3xf32> to vector<8x1xf32>
    %297 = vector.broadcast %296 : vector<8x1xf32> to vector<8x512xf32>
    %298 = arith.mulf %297, %13 : vector<8x512xf32>
    %299 = arith.addf %295, %298 : vector<8x512xf32>
    %c104_82 = arith.constant 104 : index
    %c0_83 = arith.constant 0 : index
    %300 = vector.load %arg3[%c104_82, %c0_83] : memref<128x1xf32, #tpu.memory_space<vmem>>, vector<8x1xf32>
    %301 = vector.broadcast %300 : vector<8x1xf32> to vector<8x512xf32>
    %302 = arith.addf %299, %301 : vector<8x512xf32>
    %cst_84 = arith.constant 0.000000e+00 : f32
    %303 = vector.broadcast %cst_84 : f32 to vector<8x512xf32>
    %304 = arith.maximumf %302, %303 : vector<8x512xf32>
    %c104_85 = arith.constant 104 : index
    %c0_86 = arith.constant 0 : index
    %305 = vector.load %arg4[%c104_85, %c0_86] : memref<128x1xf32, #tpu.memory_space<vmem>>, vector<8x1xf32>
    %306 = vector.broadcast %305 : vector<8x1xf32> to vector<8x512xf32>
    %307 = arith.mulf %304, %306 : vector<8x512xf32>
    %308 = arith.addf %287, %307 : vector<8x512xf32>
    %c112 = arith.constant 112 : index
    %c0_87 = arith.constant 0 : index
    %309 = vector.load %arg2[%c112, %c0_87] : memref<128x3xf32, #tpu.memory_space<vmem>>, vector<8x3xf32>
    %310 = vector.extract_strided_slice %309 {offsets = [0, 0], sizes = [8, 1], strides = [1, 1]} : vector<8x3xf32> to vector<8x1xf32>
    %311 = vector.broadcast %310 : vector<8x1xf32> to vector<8x512xf32>
    %312 = arith.mulf %311, %7 : vector<8x512xf32>
    %313 = vector.extract_strided_slice %309 {offsets = [0, 1], sizes = [8, 1], strides = [1, 1]} : vector<8x3xf32> to vector<8x1xf32>
    %314 = vector.broadcast %313 : vector<8x1xf32> to vector<8x512xf32>
    %315 = arith.mulf %314, %10 : vector<8x512xf32>
    %316 = arith.addf %312, %315 : vector<8x512xf32>
    %317 = vector.extract_strided_slice %309 {offsets = [0, 2], sizes = [8, 1], strides = [1, 1]} : vector<8x3xf32> to vector<8x1xf32>
    %318 = vector.broadcast %317 : vector<8x1xf32> to vector<8x512xf32>
    %319 = arith.mulf %318, %13 : vector<8x512xf32>
    %320 = arith.addf %316, %319 : vector<8x512xf32>
    %c112_88 = arith.constant 112 : index
    %c0_89 = arith.constant 0 : index
    %321 = vector.load %arg3[%c112_88, %c0_89] : memref<128x1xf32, #tpu.memory_space<vmem>>, vector<8x1xf32>
    %322 = vector.broadcast %321 : vector<8x1xf32> to vector<8x512xf32>
    %323 = arith.addf %320, %322 : vector<8x512xf32>
    %cst_90 = arith.constant 0.000000e+00 : f32
    %324 = vector.broadcast %cst_90 : f32 to vector<8x512xf32>
    %325 = arith.maximumf %323, %324 : vector<8x512xf32>
    %c112_91 = arith.constant 112 : index
    %c0_92 = arith.constant 0 : index
    %326 = vector.load %arg4[%c112_91, %c0_92] : memref<128x1xf32, #tpu.memory_space<vmem>>, vector<8x1xf32>
    %327 = vector.broadcast %326 : vector<8x1xf32> to vector<8x512xf32>
    %328 = arith.mulf %325, %327 : vector<8x512xf32>
    %329 = arith.addf %308, %328 : vector<8x512xf32>
    %c120 = arith.constant 120 : index
    %c0_93 = arith.constant 0 : index
    %330 = vector.load %arg2[%c120, %c0_93] : memref<128x3xf32, #tpu.memory_space<vmem>>, vector<8x3xf32>
    %331 = vector.extract_strided_slice %330 {offsets = [0, 0], sizes = [8, 1], strides = [1, 1]} : vector<8x3xf32> to vector<8x1xf32>
    %332 = vector.broadcast %331 : vector<8x1xf32> to vector<8x512xf32>
    %333 = arith.mulf %332, %7 : vector<8x512xf32>
    %334 = vector.extract_strided_slice %330 {offsets = [0, 1], sizes = [8, 1], strides = [1, 1]} : vector<8x3xf32> to vector<8x1xf32>
    %335 = vector.broadcast %334 : vector<8x1xf32> to vector<8x512xf32>
    %336 = arith.mulf %335, %10 : vector<8x512xf32>
    %337 = arith.addf %333, %336 : vector<8x512xf32>
    %338 = vector.extract_strided_slice %330 {offsets = [0, 2], sizes = [8, 1], strides = [1, 1]} : vector<8x3xf32> to vector<8x1xf32>
    %339 = vector.broadcast %338 : vector<8x1xf32> to vector<8x512xf32>
    %340 = arith.mulf %339, %13 : vector<8x512xf32>
    %341 = arith.addf %337, %340 : vector<8x512xf32>
    %c120_94 = arith.constant 120 : index
    %c0_95 = arith.constant 0 : index
    %342 = vector.load %arg3[%c120_94, %c0_95] : memref<128x1xf32, #tpu.memory_space<vmem>>, vector<8x1xf32>
    %343 = vector.broadcast %342 : vector<8x1xf32> to vector<8x512xf32>
    %344 = arith.addf %341, %343 : vector<8x512xf32>
    %cst_96 = arith.constant 0.000000e+00 : f32
    %345 = vector.broadcast %cst_96 : f32 to vector<8x512xf32>
    %346 = arith.maximumf %344, %345 : vector<8x512xf32>
    %c120_97 = arith.constant 120 : index
    %c0_98 = arith.constant 0 : index
    %347 = vector.load %arg4[%c120_97, %c0_98] : memref<128x1xf32, #tpu.memory_space<vmem>>, vector<8x1xf32>
    %348 = vector.broadcast %347 : vector<8x1xf32> to vector<8x512xf32>
    %349 = arith.mulf %346, %348 : vector<8x512xf32>
    %350 = arith.addf %329, %349 : vector<8x512xf32>
    %cst_99 = arith.constant dense<0.000000e+00> : vector<512xf32>
    %351 = vector.multi_reduction <add>, %350, %cst_99 [0] : vector<8x512xf32> to vector<512xf32>
    %352 = vector.shape_cast %351 : vector<512xf32> to vector<1x512xf32>
    %353 = vector.broadcast %0 : f32 to vector<1x512xf32>
    %354 = arith.addf %352, %353 : vector<1x512xf32>
    %c0_100 = arith.constant 0 : index
    %355 = arith.index_cast %2 : i32 to index
    %356 = vector.load %arg6[%c0_100, %355] : memref<1x512xf32, #tpu.memory_space<vmem>>, vector<1x512xf32>
    tpu.vector_store %arg6[%c0_100, %355], %354 {strides = array<i32>} : memref<1x512xf32, #tpu.memory_space<vmem>>, vector<1x512xf32>,
    %c1_i32 = arith.constant 1 : i32
    return
  }
  func.func @transform_0(%arg0: i32) -> (i32, i32) {
    %c0_i32 = arith.constant 0 : i32
    %c0_i32_0 = arith.constant 0 : i32
    return %c0_i32, %arg0 : i32, i32
  }
  func.func @transform_1(%arg0: i32) -> (i32, i32) {
    %c0_i32 = arith.constant 0 : i32
    %c0_i32_0 = arith.constant 0 : i32
    %c0_i32_1 = arith.constant 0 : i32
    return %c0_i32, %c0_i32_0 : i32, i32
  }
  func.func @transform_2(%arg0: i32) -> (i32, i32) {
    %c0_i32 = arith.constant 0 : i32
    %c0_i32_0 = arith.constant 0 : i32
    %c0_i32_1 = arith.constant 0 : i32
    return %c0_i32, %c0_i32_0 : i32, i32
  }
  func.func @transform_3(%arg0: i32) -> (i32, i32) {
    %c0_i32 = arith.constant 0 : i32
    %c0_i32_0 = arith.constant 0 : i32
    %c0_i32_1 = arith.constant 0 : i32
    return %c0_i32, %c0_i32_0 : i32, i32
  }
  func.func @transform_4(%arg0: i32) -> (i32, i32) {
    %c0_i32 = arith.constant 0 : i32
    %c0_i32_0 = arith.constant 0 : i32
    %c0_i32_1 = arith.constant 0 : i32
    return %c0_i32, %c0_i32_0 : i32, i32
  }
  func.func @transform_5(%arg0: i32) -> (i32, i32) {
    %c0_i32 = arith.constant 0 : i32
    %c0_i32_0 = arith.constant 0 : i32
    return %c0_i32, %arg0 : i32, i32
  }
}

</mosaic_0001>

<llo_original>
// kernel: tpu_custom_call.1
$region0: #{tpu_custom_call.1}
  #allocation0 [shape = 'u32[]', space=smem, size = 0x4, offset = 0x4, fixed_abs, tag = 'smem constant byte address 0x4 - core index']
  #allocation1 [shape = 'u32[144,128]{1,0:T(1,128)}', space=vmem, size = 0x12000, scoped, tag = 'internal scratch']
  #allocation2 [shape = 'f32[1,1]{1,0:T(1,128)S(6)}', space=smem, size = 0x200, scoped, tag = 'scoped memory for tpu_custom_call.1']
  %s0 = inlined_call_operand.vmem [shape: f32[3,512], index: 0, kind: input, shape index: {}]
  %s1 = inlined_call_operand.vmem [shape: f32[128,3], index: 1, kind: input, shape index: {}]
  %s2 = inlined_call_operand.vmem [shape: f32[128,1], index: 2, kind: input, shape index: {}]
  %s3 = inlined_call_operand.vmem [shape: f32[128,1], index: 3, kind: input, shape index: {}]
  %s4 = inlined_call_operand.<no memory space> [shape: f32[1,1], index: 4, kind: input, shape index: {}]
  %s5 = inlined_call_operand.hbm [shape: f32[1,512], index: 5, kind: output, shape index: {}]
  %s6 = sld [smem:[#allocation0]]
  $region30: #{tpu_custom_call.1} parent=0
    _
  %s8 = ssub.s32 1, %s6
  %s9 = scalar_select 0, %s8, %s6
  %10 = sst [smem:[#allocation2]] %s4
  $region1: #{tpu_custom_call.1} parent=0
    #allocation3 [shape = 'u8[2048]{0}', space=vmem, size = 0x800, scoped, tag = 'output window, operand 0, single buffered']
    #allocation4 [shape = 's32[1]{0}', space=sflag, size = 0x4, scoped, tag = 'scoped memory for tpu_custom_call.1']
    %11 = vsyncpa [#allocation4], 0
    // Predicated region
    $region2: #{tpu_custom_call.1} parent=1 // pred_check
      _
    $region3: #{tpu_custom_call.1} parent=1 // pred_check_branch
      %13 = sbr.rel (0) target = $region5
    $region4: #{tpu_custom_call.1} parent=1 // pred_region
      _
    $region5: #{tpu_custom_call.1} parent=1 // pred_fallthru
      _
    // Predicated region
    $region6: #{tpu_custom_call.1} parent=1 // pred_check
      _
    $region7: #{tpu_custom_call.1} parent=1 // pred_check_branch
      %15 = sbr.rel (0) target = $region9
    $region8: #{tpu_custom_call.1} parent=1 // pred_region
      _
    $region9: #{tpu_custom_call.1} parent=1 // pred_fallthru
      _
    // Predicated region
    $region10: #{tpu_custom_call.1} parent=1 // pred_check
      _
    $region11: #{tpu_custom_call.1} parent=1 // pred_check_branch
      %17 = sbr.rel (0) target = $region13
    $region12: #{tpu_custom_call.1} parent=1 // pred_region
      _
    $region13: #{tpu_custom_call.1} parent=1 // pred_fallthru
      _
    // Predicated region
    $region14: #{tpu_custom_call.1} parent=1 // pred_check
      _
    $region15: #{tpu_custom_call.1} parent=1 // pred_check_branch
      %19 = sbr.rel (0) target = $region17
    $region16: #{tpu_custom_call.1} parent=1 // pred_region
      _
    $region17: #{tpu_custom_call.1} parent=1 // pred_fallthru
      _
    // Predicated region
    $region18: #{tpu_custom_call.1} parent=1 // pred_check
      _
    $region19: #{tpu_custom_call.1} parent=1 // pred_check_branch
      %21 = sbr.rel (0) target = $region21
    $region20: #{tpu_custom_call.1} parent=1 // pred_region
      _
    $region21: #{tpu_custom_call.1} parent=1 // pred_fallthru
      _
    %s22 = sld [smem:[#allocation2]]
    %v23 = vld [vmem:[%s0] sm:$0x77]
    %v24 = vld [vmem:[%s0 + $0x8] sm:$0x77]
    %v27 = vlaneseq
    %v28 = vshrl.u32 %v27, 7
    %v29 = vsub.s32 0, %v28
    %v30 = vrot.slane %v23, %v29
    %v31 = vlaneseq
    %v32 = vshrl.u32 %v31, 7
    %v33 = vsub.s32 4, %v32
    %v34 = vrot.slane %v23, %v33
    %v35 = vlaneseq
    %v36 = vshrl.u32 %v35, 7
    %v37 = vsub.s32 0, %v36
    %v38 = vrot.slane %v24, %v37
    %v39 = vlaneseq
    %v40 = vshrl.u32 %v39, 7
    %v41 = vsub.s32 4, %v40
    %v42 = vrot.slane %v24, %v41
    %v47 = vlaneseq
    %v48 = vshrl.u32 %v47, 7
    %v49 = vsub.s32 0, %v48
    %v50 = vrot.slane %v30, %v49
    %v51 = vlaneseq
    %v52 = vshrl.u32 %v51, 7
    %v53 = vsub.s32 0, %v52
    %v54 = vrot.slane %v34, %v53
    %v55 = vlaneseq
    %v56 = vshrl.u32 %v55, 7
    %v57 = vsub.s32 0, %v56
    %v58 = vrot.slane %v38, %v57
    %v59 = vlaneseq
    %v60 = vshrl.u32 %v59, 7
    %v61 = vsub.s32 0, %v60
    %v62 = vrot.slane %v42, %v61
    %v63 = vlaneseq
    %v64 = vshrl.u32 %v63, 7
    %v65 = vsub.s32 1, %v64
    %v66 = vrot.slane %v23, %v65
    %v67 = vlaneseq
    %v68 = vshrl.u32 %v67, 7
    %v69 = vsub.s32 5, %v68
    %v70 = vrot.slane %v23, %v69
    %v71 = vlaneseq
    %v72 = vshrl.u32 %v71, 7
    %v73 = vsub.s32 1, %v72
    %v74 = vrot.slane %v24, %v73
    %v75 = vlaneseq
    %v76 = vshrl.u32 %v75, 7
    %v77 = vsub.s32 5, %v76
    %v78 = vrot.slane %v24, %v77
    %v83 = vlaneseq
    %v84 = vshrl.u32 %v83, 7
    %v85 = vsub.s32 1, %v84
    %v86 = vrot.slane %v66, %v85
    %v87 = vlaneseq
    %v88 = vshrl.u32 %v87, 7
    %v89 = vsub.s32 1, %v88
    %v90 = vrot.slane %v70, %v89
    %v91 = vlaneseq
    %v92 = vshrl.u32 %v91, 7
    %v93 = vsub.s32 1, %v92
    %v94 = vrot.slane %v74, %v93
    %v95 = vlaneseq
    %v96 = vshrl.u32 %v95, 7
    %v97 = vsub.s32 1, %v96
    %v98 = vrot.slane %v78, %v97
    %v99 = vlaneseq
    %v100 = vshrl.u32 %v99, 7
    %v101 = vsub.s32 2, %v100
    %v102 = vrot.slane %v23, %v101
    %v103 = vlaneseq
    %v104 = vshrl.u32 %v103, 7
    %v105 = vsub.s32 6, %v104
    %v106 = vrot.slane %v23, %v105
    %v107 = vlaneseq
    %v108 = vshrl.u32 %v107, 7
    %v109 = vsub.s32 2, %v108
    %v110 = vrot.slane %v24, %v109
    %v111 = vlaneseq
    %v112 = vshrl.u32 %v111, 7
    %v113 = vsub.s32 6, %v112
    %v114 = vrot.slane %v24, %v113
    %v119 = vlaneseq
    %v120 = vshrl.u32 %v119, 7
    %v121 = vsub.s32 2, %v120
    %v122 = vrot.slane %v102, %v121
    %v123 = vlaneseq
    %v124 = vshrl.u32 %v123, 7
    %v125 = vsub.s32 2, %v124
    %v126 = vrot.slane %v106, %v125
    %v127 = vlaneseq
    %v128 = vshrl.u32 %v127, 7
    %v129 = vsub.s32 2, %v128
    %v130 = vrot.slane %v110, %v129
    %v131 = vlaneseq
    %v132 = vshrl.u32 %v131, 7
    %v133 = vsub.s32 2, %v132
    %v134 = vrot.slane %v114, %v133
    %v135 = vld [vmem:[%s1] sm:$0xff]
    %137 = vset.pattern.permute.xlu0 0
    %138 = vperm.xlu0 %137, %v135
    %v139 = vpop.permute.xlu0 %138
    %v141 = vmul.f32 %v139, %v50
    %v142 = vmul.f32 %v139, %v54
    %v143 = vmul.f32 %v139, %v58
    %v144 = vmul.f32 %v139, %v62
    %145 = vset.pattern.permute.xlu0 1
    %146 = vperm.xlu0 %145, %v135
    %v147 = vpop.permute.xlu0 %146
    %v149 = vmul.f32 %v147, %v86
    %v150 = vmul.f32 %v147, %v90
    %v151 = vmul.f32 %v147, %v94
    %v152 = vmul.f32 %v147, %v98
    %v153 = vadd.f32 %v141, %v149
    %v154 = vadd.f32 %v142, %v150
    %v155 = vadd.f32 %v143, %v151
    %v156 = vadd.f32 %v144, %v152
    %157 = vset.pattern.permute.xlu0 2
    %158 = vperm.xlu0 %157, %v135
    %v159 = vpop.permute.xlu0 %158
    %v161 = vmul.f32 %v159, %v122
    %v162 = vmul.f32 %v159, %v126
    %v163 = vmul.f32 %v159, %v130
    %v164 = vmul.f32 %v159, %v134
    %v165 = vadd.f32 %v153, %v161
    %v166 = vadd.f32 %v154, %v162
    %v167 = vadd.f32 %v155, %v163
    %v168 = vadd.f32 %v156, %v164
    %v169 = vld [vmem:[%s2] sm:$0xff]
    %171 = vset.pattern.permute.xlu0 0
    %172 = vperm.xlu0 %171, %v169
    %v173 = vpop.permute.xlu0 %172
    %v175 = vadd.f32 %v165, %v173
    %v176 = vadd.f32 %v166, %v173
    %v177 = vadd.f32 %v167, %v173
    %v178 = vadd.f32 %v168, %v173
    %v179 = vmax.f32 %v175, 0.0
    %v180 = vmax.f32 %v176, 0.0
    %v181 = vmax.f32 %v177, 0.0
    %v182 = vmax.f32 %v178, 0.0
    %v183 = vld [vmem:[%s3] sm:$0xff]
    %185 = vset.pattern.permute.xlu0 0
    %186 = vperm.xlu0 %185, %v183
    %v187 = vpop.permute.xlu0 %186
    %v189 = vmul.f32 %v179, %v187
    %v190 = vmul.f32 %v180, %v187
    %v191 = vmul.f32 %v181, %v187
    %v192 = vmul.f32 %v182, %v187
    %v193 = vadd.f32 %v189, 0.0
    %v194 = vadd.f32 %v190, 0.0
    %v195 = vadd.f32 %v191, 0.0
    %v196 = vadd.f32 %v192, 0.0
    %v197 = vld [vmem:[%s1 + $0x8] sm:$0xff]
    %199 = vset.pattern.permute.xlu0 0
    %200 = vperm.xlu0 %199, %v197
    %v201 = vpop.permute.xlu0 %200
    %v203 = vmul.f32 %v201, %v50
    %v204 = vmul.f32 %v201, %v54
    %v205 = vmul.f32 %v201, %v58
    %v206 = vmul.f32 %v201, %v62
    %207 = vset.pattern.permute.xlu0 1
    %208 = vperm.xlu0 %207, %v197
    %v209 = vpop.permute.xlu0 %208
    %v211 = vmul.f32 %v209, %v86
    %v212 = vmul.f32 %v209, %v90
    %v213 = vmul.f32 %v209, %v94
    %v214 = vmul.f32 %v209, %v98
    %v215 = vadd.f32 %v203, %v211
    %v216 = vadd.f32 %v204, %v212
    %v217 = vadd.f32 %v205, %v213
    %v218 = vadd.f32 %v206, %v214
    %219 = vset.pattern.permute.xlu0 2
    %220 = vperm.xlu0 %219, %v197
    %v221 = vpop.permute.xlu0 %220
    %v223 = vmul.f32 %v221, %v122
    %v224 = vmul.f32 %v221, %v126
    %v225 = vmul.f32 %v221, %v130
    %v226 = vmul.f32 %v221, %v134
    %v227 = vadd.f32 %v215, %v223
    %v228 = vadd.f32 %v216, %v224
    %v229 = vadd.f32 %v217, %v225
    %v230 = vadd.f32 %v218, %v226
    %v231 = vld [vmem:[%s2 + $0x8] sm:$0xff]
    %233 = vset.pattern.permute.xlu0 0
    %234 = vperm.xlu0 %233, %v231
    %v235 = vpop.permute.xlu0 %234
    %v237 = vadd.f32 %v227, %v235
    %v238 = vadd.f32 %v228, %v235
    %v239 = vadd.f32 %v229, %v235
    %v240 = vadd.f32 %v230, %v235
    %v241 = vmax.f32 %v237, 0.0
    %v242 = vmax.f32 %v238, 0.0
    %v243 = vmax.f32 %v239, 0.0
    %v244 = vmax.f32 %v240, 0.0
    %v245 = vld [vmem:[%s3 + $0x8] sm:$0xff]
    %247 = vset.pattern.permute.xlu0 0
    %248 = vperm.xlu0 %247, %v245
    %v249 = vpop.permute.xlu0 %248
    %v251 = vmul.f32 %v241, %v249
    %v252 = vmul.f32 %v242, %v249
    %v253 = vmul.f32 %v243, %v249
    %v254 = vmul.f32 %v244, %v249
    %v255 = vadd.f32 %v193, %v251
    %v256 = vadd.f32 %v194, %v252
    %v257 = vadd.f32 %v195, %v253
    %v258 = vadd.f32 %v196, %v254
    %v259 = vld [vmem:[%s1 + $0x10] sm:$0xff]
    %261 = vset.pattern.permute.xlu0 0
    %262 = vperm.xlu0 %261, %v259
    %v263 = vpop.permute.xlu0 %262
    %v265 = vmul.f32 %v263, %v50
    %v266 = vmul.f32 %v263, %v54
    %v267 = vmul.f32 %v263, %v58
    %v268 = vmul.f32 %v263, %v62
    %269 = vset.pattern.permute.xlu0 1
    %270 = vperm.xlu0 %269, %v259
    %v271 = vpop.permute.xlu0 %270
    %v273 = vmul.f32 %v271, %v86
    %v274 = vmul.f32 %v271, %v90
    %v275 = vmul.f32 %v271, %v94
    %v276 = vmul.f32 %v271, %v98
    %v277 = vadd.f32 %v265, %v273
    %v278 = vadd.f32 %v266, %v274
    %v279 = vadd.f32 %v267, %v275
    %v280 = vadd.f32 %v268, %v276
    %281 = vset.pattern.permute.xlu0 2
    %282 = vperm.xlu0 %281, %v259
    %v283 = vpop.permute.xlu0 %282
    %v285 = vmul.f32 %v283, %v122
    %v286 = vmul.f32 %v283, %v126
    %v287 = vmul.f32 %v283, %v130
    %v288 = vmul.f32 %v283, %v134
    %v289 = vadd.f32 %v277, %v285
    %v290 = vadd.f32 %v278, %v286
    %v291 = vadd.f32 %v279, %v287
    %v292 = vadd.f32 %v280, %v288
    %v293 = vld [vmem:[%s2 + $0x10] sm:$0xff]
    %295 = vset.pattern.permute.xlu0 0
    %296 = vperm.xlu0 %295, %v293
    %v297 = vpop.permute.xlu0 %296
    %v299 = vadd.f32 %v289, %v297
    %v300 = vadd.f32 %v290, %v297
    %v301 = vadd.f32 %v291, %v297
    %v302 = vadd.f32 %v292, %v297
    %v303 = vmax.f32 %v299, 0.0
    %v304 = vmax.f32 %v300, 0.0
    %v305 = vmax.f32 %v301, 0.0
    %v306 = vmax.f32 %v302, 0.0
    %v307 = vld [vmem:[%s3 + $0x10] sm:$0xff]
    %309 = vset.pattern.permute.xlu0 0
    %310 = vperm.xlu0 %309, %v307
    %v311 = vpop.permute.xlu0 %310
    %v313 = vmul.f32 %v303, %v311
    %v314 = vmul.f32 %v304, %v311
    %v315 = vmul.f32 %v305, %v311
    %v316 = vmul.f32 %v306, %v311
    %v317 = vadd.f32 %v255, %v313
    %v318 = vadd.f32 %v256, %v314
    %v319 = vadd.f32 %v257, %v315
    %v320 = vadd.f32 %v258, %v316
    %v321 = vld [vmem:[%s1 + $0x18] sm:$0xff]
    %323 = vset.pattern.permute.xlu0 0
    %324 = vperm.xlu0 %323, %v321
    %v325 = vpop.permute.xlu0 %324
    %v327 = vmul.f32 %v325, %v50
    %v328 = vmul.f32 %v325, %v54
    %v329 = vmul.f32 %v325, %v58
    %v330 = vmul.f32 %v325, %v62
    %331 = vset.pattern.permute.xlu0 1
    %332 = vperm.xlu0 %331, %v321
    %v333 = vpop.permute.xlu0 %332
    %v335 = vmul.f32 %v333, %v86
    %v336 = vmul.f32 %v333, %v90
    %v337 = vmul.f32 %v333, %v94
    %v338 = vmul.f32 %v333, %v98
    %v339 = vadd.f32 %v327, %v335
    %v340 = vadd.f32 %v328, %v336
    %v341 = vadd.f32 %v329, %v337
    %v342 = vadd.f32 %v330, %v338
    %343 = vset.pattern.permute.xlu0 2
    %344 = vperm.xlu0 %343, %v321
    %v345 = vpop.permute.xlu0 %344
    %v347 = vmul.f32 %v345, %v122
    %v348 = vmul.f32 %v345, %v126
    %v349 = vmul.f32 %v345, %v130
    %v350 = vmul.f32 %v345, %v134
    %v351 = vadd.f32 %v339, %v347
    %v352 = vadd.f32 %v340, %v348
    %v353 = vadd.f32 %v341, %v349
    %v354 = vadd.f32 %v342, %v350
    %v355 = vld [vmem:[%s2 + $0x18] sm:$0xff]
    %357 = vset.pattern.permute.xlu0 0
    %358 = vperm.xlu0 %357, %v355
    %v359 = vpop.permute.xlu0 %358
    %v361 = vadd.f32 %v351, %v359
    %v362 = vadd.f32 %v352, %v359
    %v363 = vadd.f32 %v353, %v359
    %v364 = vadd.f32 %v354, %v359
    %v365 = vmax.f32 %v361, 0.0
    %v366 = vmax.f32 %v362, 0.0
    %v367 = vmax.f32 %v363, 0.0
    %v368 = vmax.f32 %v364, 0.0
    %v369 = vld [vmem:[%s3 + $0x18] sm:$0xff]
    %371 = vset.pattern.permute.xlu0 0
    %372 = vperm.xlu0 %371, %v369
    %v373 = vpop.permute.xlu0 %372
    %v375 = vmul.f32 %v365, %v373
    %v376 = vmul.f32 %v366, %v373
    %v377 = vmul.f32 %v367, %v373
    %v378 = vmul.f32 %v368, %v373
    %v379 = vadd.f32 %v317, %v375
    %v380 = vadd.f32 %v318, %v376
    %v381 = vadd.f32 %v319, %v377
    %v382 = vadd.f32 %v320, %v378
    %v383 = vld [vmem:[%s1 + $0x20] sm:$0xff]
    %385 = vset.pattern.permute.xlu0 0
    %386 = vperm.xlu0 %385, %v383
    %v387 = vpop.permute.xlu0 %386
    %v389 = vmul.f32 %v387, %v50
    %v390 = vmul.f32 %v387, %v54
    %v391 = vmul.f32 %v387, %v58
    %v392 = vmul.f32 %v387, %v62
    %393 = vset.pattern.permute.xlu0 1
    %394 = vperm.xlu0 %393, %v383
    %v395 = vpop.permute.xlu0 %394
    %v397 = vmul.f32 %v395, %v86
    %v398 = vmul.f32 %v395, %v90
    %v399 = vmul.f32 %v395, %v94
    %v400 = vmul.f32 %v395, %v98
    %v401 = vadd.f32 %v389, %v397
    %v402 = vadd.f32 %v390, %v398
    %v403 = vadd.f32 %v391, %v399
    %v404 = vadd.f32 %v392, %v400
    %405 = vset.pattern.permute.xlu0 2
    %406 = vperm.xlu0 %405, %v383
    %v407 = vpop.permute.xlu0 %406
    %v409 = vmul.f32 %v407, %v122
    %v410 = vmul.f32 %v407, %v126
    %v411 = vmul.f32 %v407, %v130
    %v412 = vmul.f32 %v407, %v134
    %v413 = vadd.f32 %v401, %v409
    %v414 = vadd.f32 %v402, %v410
    %v415 = vadd.f32 %v403, %v411
    %v416 = vadd.f32 %v404, %v412
    %v417 = vld [vmem:[%s2 + $0x20] sm:$0xff]
    %419 = vset.pattern.permute.xlu0 0
    %420 = vperm.xlu0 %419, %v417
    %v421 = vpop.permute.xlu0 %420
    %v423 = vadd.f32 %v413, %v421
    %v424 = vadd.f32 %v414, %v421
    %v425 = vadd.f32 %v415, %v421
    %v426 = vadd.f32 %v416, %v421
    %v427 = vmax.f32 %v423, 0.0
    %v428 = vmax.f32 %v424, 0.0
    %v429 = vmax.f32 %v425, 0.0
    %v430 = vmax.f32 %v426, 0.0
    %v431 = vld [vmem:[%s3 + $0x20] sm:$0xff]
    %433 = vset.pattern.permute.xlu0 0
    %434 = vperm.xlu0 %433, %v431
    %v435 = vpop.permute.xlu0 %434
    %v437 = vmul.f32 %v427, %v435
    %v438 = vmul.f32 %v428, %v435
    %v439 = vmul.f32 %v429, %v435
    %v440 = vmul.f32 %v430, %v435
    %v441 = vadd.f32 %v379, %v437
    %v442 = vadd.f32 %v380, %v438
    %v443 = vadd.f32 %v381, %v439
    %v444 = vadd.f32 %v382, %v440
    %v445 = vld [vmem:[%s1 + $0x28] sm:$0xff]
    %447 = vset.pattern.permute.xlu0 0
    %448 = vperm.xlu0 %447, %v445
    %v449 = vpop.permute.xlu0 %448
    %v451 = vmul.f32 %v449, %v50
    %v452 = vmul.f32 %v449, %v54
    %v453 = vmul.f32 %v449, %v58
    %v454 = vmul.f32 %v449, %v62
    %455 = vset.pattern.permute.xlu0 1
    %456 = vperm.xlu0 %455, %v445
    %v457 = vpop.permute.xlu0 %456
    %v459 = vmul.f32 %v457, %v86
    %v460 = vmul.f32 %v457, %v90
    %v461 = vmul.f32 %v457, %v94
    %v462 = vmul.f32 %v457, %v98
    %v463 = vadd.f32 %v451, %v459
    %v464 = vadd.f32 %v452, %v460
    %v465 = vadd.f32 %v453, %v461
    %v466 = vadd.f32 %v454, %v462
    %467 = vset.pattern.permute.xlu0 2
    %468 = vperm.xlu0 %467, %v445
    %v469 = vpop.permute.xlu0 %468
    %v471 = vmul.f32 %v469, %v122
    %v472 = vmul.f32 %v469, %v126
    %v473 = vmul.f32 %v469, %v130
    %v474 = vmul.f32 %v469, %v134
    %v475 = vadd.f32 %v463, %v471
    %v476 = vadd.f32 %v464, %v472
    %v477 = vadd.f32 %v465, %v473
    %v478 = vadd.f32 %v466, %v474
    %v479 = vld [vmem:[%s2 + $0x28] sm:$0xff]
    %481 = vset.pattern.permute.xlu0 0
    %482 = vperm.xlu0 %481, %v479
    %v483 = vpop.permute.xlu0 %482
    %v485 = vadd.f32 %v475, %v483
    %v486 = vadd.f32 %v476, %v483
    %v487 = vadd.f32 %v477, %v483
    %v488 = vadd.f32 %v478, %v483
    %v489 = vmax.f32 %v485, 0.0
    %v490 = vmax.f32 %v486, 0.0
    %v491 = vmax.f32 %v487, 0.0
    %v492 = vmax.f32 %v488, 0.0
    %v493 = vld [vmem:[%s3 + $0x28] sm:$0xff]
    %495 = vset.pattern.permute.xlu0 0
    %496 = vperm.xlu0 %495, %v493
    %v497 = vpop.permute.xlu0 %496
    %v499 = vmul.f32 %v489, %v497
    %v500 = vmul.f32 %v490, %v497
    %v501 = vmul.f32 %v491, %v497
    %v502 = vmul.f32 %v492, %v497
    %v503 = vadd.f32 %v441, %v499
    %v504 = vadd.f32 %v442, %v500
    %v505 = vadd.f32 %v443, %v501
    %v506 = vadd.f32 %v444, %v502
    %v507 = vld [vmem:[%s1 + $0x30] sm:$0xff]
    %509 = vset.pattern.permute.xlu0 0
    %510 = vperm.xlu0 %509, %v507
    %v511 = vpop.permute.xlu0 %510
    %v513 = vmul.f32 %v511, %v50
    %v514 = vmul.f32 %v511, %v54
    %v515 = vmul.f32 %v511, %v58
    %v516 = vmul.f32 %v511, %v62
    %517 = vset.pattern.permute.xlu0 1
    %518 = vperm.xlu0 %517, %v507
    %v519 = vpop.permute.xlu0 %518
    %v521 = vmul.f32 %v519, %v86
    %v522 = vmul.f32 %v519, %v90
    %v523 = vmul.f32 %v519, %v94
    %v524 = vmul.f32 %v519, %v98
    %v525 = vadd.f32 %v513, %v521
    %v526 = vadd.f32 %v514, %v522
    %v527 = vadd.f32 %v515, %v523
    %v528 = vadd.f32 %v516, %v524
    %529 = vset.pattern.permute.xlu0 2
    %530 = vperm.xlu0 %529, %v507
    %v531 = vpop.permute.xlu0 %530
    %v533 = vmul.f32 %v531, %v122
    %v534 = vmul.f32 %v531, %v126
    %v535 = vmul.f32 %v531, %v130
    %v536 = vmul.f32 %v531, %v134
    %v537 = vadd.f32 %v525, %v533
    %v538 = vadd.f32 %v526, %v534
    %v539 = vadd.f32 %v527, %v535
    %v540 = vadd.f32 %v528, %v536
    %v541 = vld [vmem:[%s2 + $0x30] sm:$0xff]
    %543 = vset.pattern.permute.xlu0 0
    %544 = vperm.xlu0 %543, %v541
    %v545 = vpop.permute.xlu0 %544
    %v547 = vadd.f32 %v537, %v545
    %v548 = vadd.f32 %v538, %v545
    %v549 = vadd.f32 %v539, %v545
    %v550 = vadd.f32 %v540, %v545
    %v551 = vmax.f32 %v547, 0.0
    %v552 = vmax.f32 %v548, 0.0
    %v553 = vmax.f32 %v549, 0.0
    %v554 = vmax.f32 %v550, 0.0
    %v555 = vld [vmem:[%s3 + $0x30] sm:$0xff]
    %557 = vset.pattern.permute.xlu0 0
    %558 = vperm.xlu0 %557, %v555
    %v559 = vpop.permute.xlu0 %558
    %v561 = vmul.f32 %v551, %v559
    %v562 = vmul.f32 %v552, %v559
    %v563 = vmul.f32 %v553, %v559
    %v564 = vmul.f32 %v554, %v559
    %v565 = vadd.f32 %v503, %v561
    %v566 = vadd.f32 %v504, %v562
    %v567 = vadd.f32 %v505, %v563
    %v568 = vadd.f32 %v506, %v564
    %v569 = vld [vmem:[%s1 + $0x38] sm:$0xff]
    %571 = vset.pattern.permute.xlu0 0
    %572 = vperm.xlu0 %571, %v569
    %v573 = vpop.permute.xlu0 %572
    %v575 = vmul.f32 %v573, %v50
    %v576 = vmul.f32 %v573, %v54
    %v577 = vmul.f32 %v573, %v58
    %v578 = vmul.f32 %v573, %v62
    %579 = vset.pattern.permute.xlu0 1
    %580 = vperm.xlu0 %579, %v569
    %v581 = vpop.permute.xlu0 %580
    %v583 = vmul.f32 %v581, %v86
    %v584 = vmul.f32 %v581, %v90
    %v585 = vmul.f32 %v581, %v94
    %v586 = vmul.f32 %v581, %v98
    %v587 = vadd.f32 %v575, %v583
    %v588 = vadd.f32 %v576, %v584
    %v589 = vadd.f32 %v577, %v585
    %v590 = vadd.f32 %v578, %v586
    %591 = vset.pattern.permute.xlu0 2
    %592 = vperm.xlu0 %591, %v569
    %v593 = vpop.permute.xlu0 %592
    %v595 = vmul.f32 %v593, %v122
    %v596 = vmul.f32 %v593, %v126
    %v597 = vmul.f32 %v593, %v130
    %v598 = vmul.f32 %v593, %v134
    %v599 = vadd.f32 %v587, %v595
    %v600 = vadd.f32 %v588, %v596
    %v601 = vadd.f32 %v589, %v597
    %v602 = vadd.f32 %v590, %v598
    %v603 = vld [vmem:[%s2 + $0x38] sm:$0xff]
    %605 = vset.pattern.permute.xlu0 0
    %606 = vperm.xlu0 %605, %v603
    %v607 = vpop.permute.xlu0 %606
    %v609 = vadd.f32 %v599, %v607
    %v610 = vadd.f32 %v600, %v607
    %v611 = vadd.f32 %v601, %v607
    %v612 = vadd.f32 %v602, %v607
    %v613 = vmax.f32 %v609, 0.0
    %v614 = vmax.f32 %v610, 0.0
    %v615 = vmax.f32 %v611, 0.0
    %v616 = vmax.f32 %v612, 0.0
    %v617 = vld [vmem:[%s3 + $0x38] sm:$0xff]
    %619 = vset.pattern.permute.xlu0 0
    %620 = vperm.xlu0 %619, %v617
    %v621 = vpop.permute.xlu0 %620
    %v623 = vmul.f32 %v613, %v621
    %v624 = vmul.f32 %v614, %v621
    %v625 = vmul.f32 %v615, %v621
    %v626 = vmul.f32 %v616, %v621
    %v627 = vadd.f32 %v565, %v623
    %v628 = vadd.f32 %v566, %v624
    %v629 = vadd.f32 %v567, %v625
    %v630 = vadd.f32 %v568, %v626
    %v631 = vld [vmem:[%s1 + $0x40] sm:$0xff]
    %633 = vset.pattern.permute.xlu0 0
    %634 = vperm.xlu0 %633, %v631
    %v635 = vpop.permute.xlu0 %634
    %v637 = vmul.f32 %v635, %v50
    %v638 = vmul.f32 %v635, %v54
    %v639 = vmul.f32 %v635, %v58
    %v640 = vmul.f32 %v635, %v62
    %641 = vset.pattern.permute.xlu0 1
    %642 = vperm.xlu0 %641, %v631
    %v643 = vpop.permute.xlu0 %642
    %v645 = vmul.f32 %v643, %v86
    %v646 = vmul.f32 %v643, %v90
    %v647 = vmul.f32 %v643, %v94
    %v648 = vmul.f32 %v643, %v98
    %v649 = vadd.f32 %v637, %v645
    %v650 = vadd.f32 %v638, %v646
    %v651 = vadd.f32 %v639, %v647
    %v652 = vadd.f32 %v640, %v648
    %653 = vset.pattern.permute.xlu0 2
    %654 = vperm.xlu0 %653, %v631
    %v655 = vpop.permute.xlu0 %654
    %v657 = vmul.f32 %v655, %v122
    %v658 = vmul.f32 %v655, %v126
    %v659 = vmul.f32 %v655, %v130
    %v660 = vmul.f32 %v655, %v134
    %v661 = vadd.f32 %v649, %v657
    %v662 = vadd.f32 %v650, %v658
    %v663 = vadd.f32 %v651, %v659
    %v664 = vadd.f32 %v652, %v660
    %v665 = vld [vmem:[%s2 + $0x40] sm:$0xff]
    %667 = vset.pattern.permute.xlu0 0
    %668 = vperm.xlu0 %667, %v665
    %v669 = vpop.permute.xlu0 %668
    %v671 = vadd.f32 %v661, %v669
    %v672 = vadd.f32 %v662, %v669
    %v673 = vadd.f32 %v663, %v669
    %v674 = vadd.f32 %v664, %v669
    %v675 = vmax.f32 %v671, 0.0
    %v676 = vmax.f32 %v672, 0.0
    %v677 = vmax.f32 %v673, 0.0
    %v678 = vmax.f32 %v674, 0.0
    %v679 = vld [vmem:[%s3 + $0x40] sm:$0xff]
    %681 = vset.pattern.permute.xlu0 0
    %682 = vperm.xlu0 %681, %v679
    %v683 = vpop.permute.xlu0 %682
    %v685 = vmul.f32 %v675, %v683
    %v686 = vmul.f32 %v676, %v683
    %v687 = vmul.f32 %v677, %v683
    %v688 = vmul.f32 %v678, %v683
    %v689 = vadd.f32 %v627, %v685
    %v690 = vadd.f32 %v628, %v686
    %v691 = vadd.f32 %v629, %v687
    %v692 = vadd.f32 %v630, %v688
    %v693 = vld [vmem:[%s1 + $0x48] sm:$0xff]
    %695 = vset.pattern.permute.xlu0 0
    %696 = vperm.xlu0 %695, %v693
    %v697 = vpop.permute.xlu0 %696
    %v699 = vmul.f32 %v697, %v50
    %v700 = vmul.f32 %v697, %v54
    %v701 = vmul.f32 %v697, %v58
    %v702 = vmul.f32 %v697, %v62
    %703 = vset.pattern.permute.xlu0 1
    %704 = vperm.xlu0 %703, %v693
    %v705 = vpop.permute.xlu0 %704
    %v707 = vmul.f32 %v705, %v86
    %v708 = vmul.f32 %v705, %v90
    %v709 = vmul.f32 %v705, %v94
    %v710 = vmul.f32 %v705, %v98
    %v711 = vadd.f32 %v699, %v707
    %v712 = vadd.f32 %v700, %v708
    %v713 = vadd.f32 %v701, %v709
    %v714 = vadd.f32 %v702, %v710
    %715 = vset.pattern.permute.xlu0 2
    %716 = vperm.xlu0 %715, %v693
    %v717 = vpop.permute.xlu0 %716
    %v719 = vmul.f32 %v717, %v122
    %v720 = vmul.f32 %v717, %v126
    %v721 = vmul.f32 %v717, %v130
    %v722 = vmul.f32 %v717, %v134
    %v723 = vadd.f32 %v711, %v719
    %v724 = vadd.f32 %v712, %v720
    %v725 = vadd.f32 %v713, %v721
    %v726 = vadd.f32 %v714, %v722
    %v727 = vld [vmem:[%s2 + $0x48] sm:$0xff]
    %729 = vset.pattern.permute.xlu0 0
    %730 = vperm.xlu0 %729, %v727
    %v731 = vpop.permute.xlu0 %730
    %v733 = vadd.f32 %v723, %v731
    %v734 = vadd.f32 %v724, %v731
    %v735 = vadd.f32 %v725, %v731
    %v736 = vadd.f32 %v726, %v731
    %v737 = vmax.f32 %v733, 0.0
    %v738 = vmax.f32 %v734, 0.0
    %v739 = vmax.f32 %v735, 0.0
    %v740 = vmax.f32 %v736, 0.0
    %v741 = vld [vmem:[%s3 + $0x48] sm:$0xff]
    %743 = vset.pattern.permute.xlu0 0
    %744 = vperm.xlu0 %743, %v741
    %v745 = vpop.permute.xlu0 %744
    %v747 = vmul.f32 %v737, %v745
    %v748 = vmul.f32 %v738, %v745
    %v749 = vmul.f32 %v739, %v745
    %v750 = vmul.f32 %v740, %v745
    %v751 = vadd.f32 %v689, %v747
    %v752 = vadd.f32 %v690, %v748
    %v753 = vadd.f32 %v691, %v749
    %v754 = vadd.f32 %v692, %v750
    %v755 = vld [vmem:[%s1 + $0x50] sm:$0xff]
    %757 = vset.pattern.permute.xlu0 0
    %758 = vperm.xlu0 %757, %v755
    %v759 = vpop.permute.xlu0 %758
    %v761 = vmul.f32 %v759, %v50
    %v762 = vmul.f32 %v759, %v54
    %v763 = vmul.f32 %v759, %v58
    %v764 = vmul.f32 %v759, %v62
    %765 = vset.pattern.permute.xlu0 1
    %766 = vperm.xlu0 %765, %v755
    %v767 = vpop.permute.xlu0 %766
    %v769 = vmul.f32 %v767, %v86
    %v770 = vmul.f32 %v767, %v90
    %v771 = vmul.f32 %v767, %v94
    %v772 = vmul.f32 %v767, %v98
    %v773 = vadd.f32 %v761, %v769
    %v774 = vadd.f32 %v762, %v770
    %v775 = vadd.f32 %v763, %v771
    %v776 = vadd.f32 %v764, %v772
    %777 = vset.pattern.permute.xlu0 2
    %778 = vperm.xlu0 %777, %v755
    %v779 = vpop.permute.xlu0 %778
    %v781 = vmul.f32 %v779, %v122
    %v782 = vmul.f32 %v779, %v126
    %v783 = vmul.f32 %v779, %v130
    %v784 = vmul.f32 %v779, %v134
    %v785 = vadd.f32 %v773, %v781
    %v786 = vadd.f32 %v774, %v782
    %v787 = vadd.f32 %v775, %v783
    %v788 = vadd.f32 %v776, %v784
    %v789 = vld [vmem:[%s2 + $0x50] sm:$0xff]
    %791 = vset.pattern.permute.xlu0 0
    %792 = vperm.xlu0 %791, %v789
    %v793 = vpop.permute.xlu0 %792
    %v795 = vadd.f32 %v785, %v793
    %v796 = vadd.f32 %v786, %v793
    %v797 = vadd.f32 %v787, %v793
    %v798 = vadd.f32 %v788, %v793
    %v799 = vmax.f32 %v795, 0.0
    %v800 = vmax.f32 %v796, 0.0
    %v801 = vmax.f32 %v797, 0.0
    %v802 = vmax.f32 %v798, 0.0
    %v803 = vld [vmem:[%s3 + $0x50] sm:$0xff]
    %805 = vset.pattern.permute.xlu0 0
    %806 = vperm.xlu0 %805, %v803
    %v807 = vpop.permute.xlu0 %806
    %v809 = vmul.f32 %v799, %v807
    %v810 = vmul.f32 %v800, %v807
    %v811 = vmul.f32 %v801, %v807
    %v812 = vmul.f32 %v802, %v807
    %v813 = vadd.f32 %v751, %v809
    %v814 = vadd.f32 %v752, %v810
    %v815 = vadd.f32 %v753, %v811
    %v816 = vadd.f32 %v754, %v812
    %v817 = vld [vmem:[%s1 + $0x58] sm:$0xff]
    %819 = vset.pattern.permute.xlu0 0
    %820 = vperm.xlu0 %819, %v817
    %v821 = vpop.permute.xlu0 %820
    %v823 = vmul.f32 %v821, %v50
    %v824 = vmul.f32 %v821, %v54
    %v825 = vmul.f32 %v821, %v58
    %v826 = vmul.f32 %v821, %v62
    %827 = vset.pattern.permute.xlu0 1
    %828 = vperm.xlu0 %827, %v817
    %v829 = vpop.permute.xlu0 %828
    %v831 = vmul.f32 %v829, %v86
    %v832 = vmul.f32 %v829, %v90
    %v833 = vmul.f32 %v829, %v94
    %v834 = vmul.f32 %v829, %v98
    %v835 = vadd.f32 %v823, %v831
    %v836 = vadd.f32 %v824, %v832
    %v837 = vadd.f32 %v825, %v833
    %v838 = vadd.f32 %v826, %v834
    %839 = vset.pattern.permute.xlu0 2
    %840 = vperm.xlu0 %839, %v817
    %v841 = vpop.permute.xlu0 %840
    %v843 = vmul.f32 %v841, %v122
    %v844 = vmul.f32 %v841, %v126
    %v845 = vmul.f32 %v841, %v130
    %v846 = vmul.f32 %v841, %v134
    %v847 = vadd.f32 %v835, %v843
    %v848 = vadd.f32 %v836, %v844
    %v849 = vadd.f32 %v837, %v845
    %v850 = vadd.f32 %v838, %v846
    %v851 = vld [vmem:[%s2 + $0x58] sm:$0xff]
    %853 = vset.pattern.permute.xlu0 0
    %854 = vperm.xlu0 %853, %v851
    %v855 = vpop.permute.xlu0 %854
    %v857 = vadd.f32 %v847, %v855
    %v858 = vadd.f32 %v848, %v855
    %v859 = vadd.f32 %v849, %v855
    %v860 = vadd.f32 %v850, %v855
    %v861 = vmax.f32 %v857, 0.0
    %v862 = vmax.f32 %v858, 0.0
    %v863 = vmax.f32 %v859, 0.0
    %v864 = vmax.f32 %v860, 0.0
    %v865 = vld [vmem:[%s3 + $0x58] sm:$0xff]
    %867 = vset.pattern.permute.xlu0 0
    %868 = vperm.xlu0 %867, %v865
    %v869 = vpop.permute.xlu0 %868
    %v871 = vmul.f32 %v861, %v869
    %v872 = vmul.f32 %v862, %v869
    %v873 = vmul.f32 %v863, %v869
    %v874 = vmul.f32 %v864, %v869
    %v875 = vadd.f32 %v813, %v871
    %v876 = vadd.f32 %v814, %v872
    %v877 = vadd.f32 %v815, %v873
    %v878 = vadd.f32 %v816, %v874
    %v879 = vld [vmem:[%s1 + $0x60] sm:$0xff]
    %881 = vset.pattern.permute.xlu0 0
    %882 = vperm.xlu0 %881, %v879
    %v883 = vpop.permute.xlu0 %882
    %v885 = vmul.f32 %v883, %v50
    %v886 = vmul.f32 %v883, %v54
    %v887 = vmul.f32 %v883, %v58
    %v888 = vmul.f32 %v883, %v62
    %889 = vset.pattern.permute.xlu0 1
    %890 = vperm.xlu0 %889, %v879
    %v891 = vpop.permute.xlu0 %890
    %v893 = vmul.f32 %v891, %v86
    %v894 = vmul.f32 %v891, %v90
    %v895 = vmul.f32 %v891, %v94
    %v896 = vmul.f32 %v891, %v98
    %v897 = vadd.f32 %v885, %v893
    %v898 = vadd.f32 %v886, %v894
    %v899 = vadd.f32 %v887, %v895
    %v900 = vadd.f32 %v888, %v896
    %901 = vset.pattern.permute.xlu0 2
    %902 = vperm.xlu0 %901, %v879
    %v903 = vpop.permute.xlu0 %902
    %v905 = vmul.f32 %v903, %v122
    %v906 = vmul.f32 %v903, %v126
    %v907 = vmul.f32 %v903, %v130
    %v908 = vmul.f32 %v903, %v134
    %v909 = vadd.f32 %v897, %v905
    %v910 = vadd.f32 %v898, %v906
    %v911 = vadd.f32 %v899, %v907
    %v912 = vadd.f32 %v900, %v908
    %v913 = vld [vmem:[%s2 + $0x60] sm:$0xff]
    %915 = vset.pattern.permute.xlu0 0
    %916 = vperm.xlu0 %915, %v913
    %v917 = vpop.permute.xlu0 %916
    %v919 = vadd.f32 %v909, %v917
    %v920 = vadd.f32 %v910, %v917
    %v921 = vadd.f32 %v911, %v917
    %v922 = vadd.f32 %v912, %v917
    %v923 = vmax.f32 %v919, 0.0
    %v924 = vmax.f32 %v920, 0.0
    %v925 = vmax.f32 %v921, 0.0
    %v926 = vmax.f32 %v922, 0.0
    %v927 = vld [vmem:[%s3 + $0x60] sm:$0xff]
    %929 = vset.pattern.permute.xlu0 0
    %930 = vperm.xlu0 %929, %v927
    %v931 = vpop.permute.xlu0 %930
    %v933 = vmul.f32 %v923, %v931
    %v934 = vmul.f32 %v924, %v931
    %v935 = vmul.f32 %v925, %v931
    %v936 = vmul.f32 %v926, %v931
    %v937 = vadd.f32 %v875, %v933
    %v938 = vadd.f32 %v876, %v934
    %v939 = vadd.f32 %v877, %v935
    %v940 = vadd.f32 %v878, %v936
    %v941 = vld [vmem:[%s1 + $0x68] sm:$0xff]
    %943 = vset.pattern.permute.xlu0 0
    %944 = vperm.xlu0 %943, %v941
    %v945 = vpop.permute.xlu0 %944
    %v947 = vmul.f32 %v945, %v50
    %v948 = vmul.f32 %v945, %v54
    %v949 = vmul.f32 %v945, %v58
    %v950 = vmul.f32 %v945, %v62
    %951 = vset.pattern.permute.xlu0 1
    %952 = vperm.xlu0 %951, %v941
    %v953 = vpop.permute.xlu0 %952
    %v955 = vmul.f32 %v953, %v86
    %v956 = vmul.f32 %v953, %v90
    %v957 = vmul.f32 %v953, %v94
    %v958 = vmul.f32 %v953, %v98
    %v959 = vadd.f32 %v947, %v955
    %v960 = vadd.f32 %v948, %v956
    %v961 = vadd.f32 %v949, %v957
    %v962 = vadd.f32 %v950, %v958
    %963 = vset.pattern.permute.xlu0 2
    %964 = vperm.xlu0 %963, %v941
    %v965 = vpop.permute.xlu0 %964
    %v967 = vmul.f32 %v965, %v122
    %v968 = vmul.f32 %v965, %v126
    %v969 = vmul.f32 %v965, %v130
    %v970 = vmul.f32 %v965, %v134
    %v971 = vadd.f32 %v959, %v967
    %v972 = vadd.f32 %v960, %v968
    %v973 = vadd.f32 %v961, %v969
    %v974 = vadd.f32 %v962, %v970
    %v975 = vld [vmem:[%s2 + $0x68] sm:$0xff]
    %977 = vset.pattern.permute.xlu0 0
    %978 = vperm.xlu0 %977, %v975
    %v979 = vpop.permute.xlu0 %978
    %v981 = vadd.f32 %v971, %v979
    %v982 = vadd.f32 %v972, %v979
    %v983 = vadd.f32 %v973, %v979
    %v984 = vadd.f32 %v974, %v979
    %v985 = vmax.f32 %v981, 0.0
    %v986 = vmax.f32 %v982, 0.0
    %v987 = vmax.f32 %v983, 0.0
    %v988 = vmax.f32 %v984, 0.0
    %v989 = vld [vmem:[%s3 + $0x68] sm:$0xff]
    %991 = vset.pattern.permute.xlu0 0
    %992 = vperm.xlu0 %991, %v989
    %v993 = vpop.permute.xlu0 %992
    %v995 = vmul.f32 %v985, %v993
    %v996 = vmul.f32 %v986, %v993
    %v997 = vmul.f32 %v987, %v993
    %v998 = vmul.f32 %v988, %v993
    %v999 = vadd.f32 %v937, %v995
    %v1000 = vadd.f32 %v938, %v996
    %v1001 = vadd.f32 %v939, %v997
    %v1002 = vadd.f32 %v940, %v998
    %v1003 = vld [vmem:[%s1 + $0x70] sm:$0xff]
    %1005 = vset.pattern.permute.xlu0 0
    %1006 = vperm.xlu0 %1005, %v1003
    %v1007 = vpop.permute.xlu0 %1006
    %v1009 = vmul.f32 %v1007, %v50
    %v1010 = vmul.f32 %v1007, %v54
    %v1011 = vmul.f32 %v1007, %v58
    %v1012 = vmul.f32 %v1007, %v62
    %1013 = vset.pattern.permute.xlu0 1
    %1014 = vperm.xlu0 %1013, %v1003
    %v1015 = vpop.permute.xlu0 %1014
    %v1017 = vmul.f32 %v1015, %v86
    %v1018 = vmul.f32 %v1015, %v90
    %v1019 = vmul.f32 %v1015, %v94
    %v1020 = vmul.f32 %v1015, %v98
    %v1021 = vadd.f32 %v1009, %v1017
    %v1022 = vadd.f32 %v1010, %v1018
    %v1023 = vadd.f32 %v1011, %v1019
    %v1024 = vadd.f32 %v1012, %v1020
    %1025 = vset.pattern.permute.xlu0 2
    %1026 = vperm.xlu0 %1025, %v1003
    %v1027 = vpop.permute.xlu0 %1026
    %v1029 = vmul.f32 %v1027, %v122
    %v1030 = vmul.f32 %v1027, %v126
    %v1031 = vmul.f32 %v1027, %v130
    %v1032 = vmul.f32 %v1027, %v134
    %v1033 = vadd.f32 %v1021, %v1029
    %v1034 = vadd.f32 %v1022, %v1030
    %v1035 = vadd.f32 %v1023, %v1031
    %v1036 = vadd.f32 %v1024, %v1032
    %v1037 = vld [vmem:[%s2 + $0x70] sm:$0xff]
    %1039 = vset.pattern.permute.xlu0 0
    %1040 = vperm.xlu0 %1039, %v1037
    %v1041 = vpop.permute.xlu0 %1040
    %v1043 = vadd.f32 %v1033, %v1041
    %v1044 = vadd.f32 %v1034, %v1041
    %v1045 = vadd.f32 %v1035, %v1041
    %v1046 = vadd.f32 %v1036, %v1041
    %v1047 = vmax.f32 %v1043, 0.0
    %v1048 = vmax.f32 %v1044, 0.0
    %v1049 = vmax.f32 %v1045, 0.0
    %v1050 = vmax.f32 %v1046, 0.0
    %v1051 = vld [vmem:[%s3 + $0x70] sm:$0xff]
    %1053 = vset.pattern.permute.xlu0 0
    %1054 = vperm.xlu0 %1053, %v1051
    %v1055 = vpop.permute.xlu0 %1054
    %v1057 = vmul.f32 %v1047, %v1055
    %v1058 = vmul.f32 %v1048, %v1055
    %v1059 = vmul.f32 %v1049, %v1055
    %v1060 = vmul.f32 %v1050, %v1055
    %v1061 = vadd.f32 %v999, %v1057
    %v1062 = vadd.f32 %v1000, %v1058
    %v1063 = vadd.f32 %v1001, %v1059
    %v1064 = vadd.f32 %v1002, %v1060
    %v1065 = vld [vmem:[%s1 + $0x78] sm:$0xff]
    %1067 = vset.pattern.permute.xlu0 0
    %1068 = vperm.xlu0 %1067, %v1065
    %v1069 = vpop.permute.xlu0 %1068
    %v1071 = vmul.f32 %v1069, %v50
    %v1072 = vmul.f32 %v1069, %v54
    %v1073 = vmul.f32 %v1069, %v58
    %v1074 = vmul.f32 %v1069, %v62
    %1075 = vset.pattern.permute.xlu0 1
    %1076 = vperm.xlu0 %1075, %v1065
    %v1077 = vpop.permute.xlu0 %1076
    %v1079 = vmul.f32 %v1077, %v86
    %v1080 = vmul.f32 %v1077, %v90
    %v1081 = vmul.f32 %v1077, %v94
    %v1082 = vmul.f32 %v1077, %v98
    %v1083 = vadd.f32 %v1071, %v1079
    %v1084 = vadd.f32 %v1072, %v1080
    %v1085 = vadd.f32 %v1073, %v1081
    %v1086 = vadd.f32 %v1074, %v1082
    %1087 = vset.pattern.permute.xlu0 2
    %1088 = vperm.xlu0 %1087, %v1065
    %v1089 = vpop.permute.xlu0 %1088
    %v1091 = vmul.f32 %v1089, %v122
    %v1092 = vmul.f32 %v1089, %v126
    %v1093 = vmul.f32 %v1089, %v130
    %v1094 = vmul.f32 %v1089, %v134
    %v1095 = vadd.f32 %v1083, %v1091
    %v1096 = vadd.f32 %v1084, %v1092
    %v1097 = vadd.f32 %v1085, %v1093
    %v1098 = vadd.f32 %v1086, %v1094
    %v1099 = vld [vmem:[%s2 + $0x78] sm:$0xff]
    %1101 = vset.pattern.permute.xlu0 0
    %1102 = vperm.xlu0 %1101, %v1099
    %v1103 = vpop.permute.xlu0 %1102
    %v1105 = vadd.f32 %v1095, %v1103
    %v1106 = vadd.f32 %v1096, %v1103
    %v1107 = vadd.f32 %v1097, %v1103
    %v1108 = vadd.f32 %v1098, %v1103
    %v1109 = vmax.f32 %v1105, 0.0
    %v1110 = vmax.f32 %v1106, 0.0
    %v1111 = vmax.f32 %v1107, 0.0
    %v1112 = vmax.f32 %v1108, 0.0
    %v1113 = vld [vmem:[%s3 + $0x78] sm:$0xff]
    %1115 = vset.pattern.permute.xlu0 0
    %1116 = vperm.xlu0 %1115, %v1113
    %v1117 = vpop.permute.xlu0 %1116
    %v1119 = vmul.f32 %v1109, %v1117
    %v1120 = vmul.f32 %v1110, %v1117
    %v1121 = vmul.f32 %v1111, %v1117
    %v1122 = vmul.f32 %v1112, %v1117
    %v1123 = vadd.f32 %v1061, %v1119
    %v1124 = vadd.f32 %v1062, %v1120
    %v1125 = vadd.f32 %v1063, %v1121
    %v1126 = vadd.f32 %v1064, %v1122
    %v1127 = vrot.slane %v1123, 4
    %v1128 = vadd.f32 %v1123, %v1127
    %v1129 = vrot.slane %v1128, 2
    %v1130 = vadd.f32 %v1128, %v1129
    %v1131 = vrot.slane %v1130, 1
    %v1132 = vadd.f32 %v1130, %v1131
    %v1133 = vrot.slane %v1124, 4
    %v1134 = vadd.f32 %v1124, %v1133
    %v1135 = vrot.slane %v1134, 2
    %v1136 = vadd.f32 %v1134, %v1135
    %v1137 = vrot.slane %v1136, 1
    %v1138 = vadd.f32 %v1136, %v1137
    %v1139 = vrot.slane %v1125, 4
    %v1140 = vadd.f32 %v1125, %v1139
    %v1141 = vrot.slane %v1140, 2
    %v1142 = vadd.f32 %v1140, %v1141
    %v1143 = vrot.slane %v1142, 1
    %v1144 = vadd.f32 %v1142, %v1143
    %v1145 = vrot.slane %v1126, 4
    %v1146 = vadd.f32 %v1126, %v1145
    %v1147 = vrot.slane %v1146, 2
    %v1148 = vadd.f32 %v1146, %v1147
    %v1149 = vrot.slane %v1148, 1
    %v1150 = vadd.f32 %v1148, %v1149
    %v1151 = vstv %s22
    %v1152 = vadd.f32 %v1132, %v1151
    %v1153 = vadd.f32 %v1138, %v1151
    %v1154 = vadd.f32 %v1144, %v1151
    %v1155 = vadd.f32 %v1150, %v1151
    %v1160 = vcombine.low %v1152, %v1153
    %v1161 = vcombine.low %v1154, %v1155
    %v1163 = vunpack.c.l.s4 1966171168
    %v1164 = vunpack.c.0.s8 %v1163
    %v1165 = vlaneseq
    %v1166 = vshrl.u32 %v1165, 7
    %v1167 = vsub.s32 %v1164, %v1166
    %v1168 = vrot.slane %v1160, %v1167
    %v1170 = vunpack.c.l.s4 1966171168
    %v1171 = vunpack.c.0.s8 %v1170
    %v1172 = vlaneseq
    %v1173 = vshrl.u32 %v1172, 7
    %v1174 = vsub.s32 %v1171, %v1173
    %v1175 = vrot.slane %v1161, %v1174
    %v1176 = vcombine.low %v1168, %v1175
    %v1178 = vunpack.c.l.s4 1966171168
    %v1179 = vunpack.c.0.s8 %v1178
    %v1180 = vlaneseq
    %v1181 = vshrl.u32 %v1180, 7
    %v1182 = vsub.s32 %v1179, %v1181
    %v1183 = vrot.slane %v1176, %v1182
    %v1185 = vlaneseq
    %vm1186 = vcmp.ge.s32.totalorder %v1185, 0
    %vm1187 = vcmp.lt.s32.totalorder %v1185, 512
    %vm1188 = vmand %vm1186, %vm1187
    %1189 = vst.msk [vmem:[#allocation3] sm:$0xf] %vm1188, %v1183
    // Predicated region
    $region22: #{tpu_custom_call.1} parent=1 // pred_check
      _
    $region23: #{tpu_custom_call.1} parent=1 // pred_check_branch
      %1191 = sbr.rel (0) target = $region25
    $region24: #{tpu_custom_call.1} parent=1 // pred_region
      %s1193 = ssub.s32 64, 64
      %1194 = vsyncadd [#allocation4], %s1193
      %s1196 = sshll.u32 [#allocation3], 4
      %s1197 = int_to_ptr.vmem [resolvable:$true] %s1196
      %1199 = dma.vmem_to_hbm [thread:$0]  %s1197, 64, %s5, [#allocation4]
    $region25: #{tpu_custom_call.1} parent=1 // pred_fallthru
      _
    // Predicated region
    $region26: #{tpu_custom_call.1} parent=1 // pred_check
      _
    $region27: #{tpu_custom_call.1} parent=1 // pred_check_branch
      %1201 = sbr.rel (0) target = $region29
    $region28: #{tpu_custom_call.1} parent=1 // pred_region
      %1202 = dma.done [#allocation4], 64
    $region29: #{tpu_custom_call.1} parent=1 // pred_fallthru
      _
    %1203 = vsyncpa [#allocation4], 1

</llo_original>
